<compile_context>
chip_gen: v7x
topology: tpu7x:2x2x1
jax: 0.10.0
libtpu: 0.0.40
codegen_flags: <defaults>
</compile_context>

<pallas_src>
import functools

import jax
import jax.numpy as jnp
from jax.experimental import pallas as pl
from jax.experimental.pallas import tpu as pltpu

_LANE = 128
_SUBLANE = 8
_LN_EPS = 1e-5


def _round_up(n, m):
    return ((n + m - 1) // m) * m


def _fused_mlp_kernel(x_ref, w_ref, bgb_ref, o_ref, *, layer_cfgs):
    """Entire MLP in one invocation; intermediates stay in vregs/VMEM.

    x_ref   : (B, P)      zero-padded input activations
    w_ref   : (L, P, P)   zero-padded weights, (in, out) layout
    bgb_ref : (L, 8, P)   row 0 = bias, row 1 = gamma, row 2 = beta (rows 3-7 pad)
    o_ref   : (B, P)      padded output (caller slices the true rows/columns)
    layer_cfgs: static tuple of (true_dout, use_ln, act) per layer.
    """
    h = x_ref[...]
    for li, (true_dout, use_ln, act) in enumerate(layer_cfgs):
        w = w_ref[li]                      # (P, P)
        bgb = bgb_ref[li]                  # (8, P)
        b = bgb[0:1, :]                    # (1, P), broadcasts over batch

        y = jnp.dot(h, w, preferred_element_type=jnp.float32,
                    precision=jax.lax.Precision.HIGHEST) + b

        if use_ln:
            gamma = bgb[1:2, :]
            beta = bgb[2:3, :]
            inv_n = 1.0 / float(true_dout)
            # Padded columns of y are exactly zero (zero-padded W cols and
            # zero bias pad), so plain row-sums over the padded width equal
            # sums over the true columns -> no masking pass needed.
            mean = jnp.sum(y, axis=-1, keepdims=True) * inv_n
            mean_sq = jnp.sum(y * y, axis=-1, keepdims=True) * inv_n
            var = mean_sq - mean * mean
            # Fold gamma into the rsqrt scale (one fewer full-width multiply).
            scale = gamma * jax.lax.rsqrt(var + _LN_EPS)
            y = (y - mean) * scale + beta  # padded cols -> 0 (gamma=beta=0)

        if act == "relu":
            y = jnp.maximum(y, 0.0)
        elif act == "tanh":
            y = jnp.tanh(y)
        elif act == "sigmoid":
            y = jax.nn.sigmoid(y)
        # act == "none": identity

        h = y
    o_ref[...] = h.astype(o_ref.dtype)


def init_mlp_params(key, num_inputs, hidden_sizes, num_outputs):
    """Deterministic parameter init (synthetic; no checkpoint load)."""
    dims = [num_inputs] + list(hidden_sizes) + [num_outputs]
    params = []
    for i in range(len(dims) - 1):
        din, dout = dims[i], dims[i + 1]
        key, kw = jax.random.split(key)
        w = jax.random.normal(kw, (din, dout), jnp.float32) / jnp.sqrt(
            jnp.float32(din))
        b = jnp.zeros((dout,), jnp.float32)
        gamma = jnp.ones((dout,), jnp.float32)
        beta = jnp.zeros((dout,), jnp.float32)
        params.append((w, b, gamma, beta))
    return params


def _build_padded_params(params, num_inputs):
    """Stack + zero-pad all layer params to one lane-dense width."""
    dims = [num_inputs] + [w.shape[1] for (w, _, _, _) in params]
    pad = _round_up(max(max(dims), _LANE), _LANE)
    n_layers = len(params)
    W = jnp.zeros((n_layers, pad, pad), jnp.float32)
    BGB = jnp.zeros((n_layers, 8, pad), jnp.float32)
    for li, (w, b, g, be) in enumerate(params):
        din, dout = w.shape
        W = W.at[li, :din, :dout].set(w)
        BGB = BGB.at[li, 0, :dout].set(b)
        BGB = BGB.at[li, 1, :dout].set(g)
        BGB = BGB.at[li, 2, :dout].set(be)
    return W, BGB, pad


def network_forward(x, params, *, use_layer_norm, activation, activation_final):
    """MLP forward: hidden layers use `activation` (+ optional LayerNorm),
    last layer uses `activation_final` (no LayerNorm on the output layer)."""
    batch, din = x.shape
    n_layers = len(params)
    num_outputs = params[-1][0].shape[1]

    W, BGB, pad = _build_padded_params(params, din)
    batch_pad = _round_up(max(batch, _SUBLANE), _SUBLANE)
    x_pad = jnp.zeros((batch_pad, pad), jnp.float32).at[:batch, :din].set(
        x.astype(jnp.float32))

    layer_cfgs = tuple(
        (int(w.shape[1]),
         bool(use_layer_norm and li != n_layers - 1),
         (activation_final if li == n_layers - 1 else activation))
        for li, (w, _, _, _) in enumerate(params)
    )

    kernel = functools.partial(_fused_mlp_kernel, layer_cfgs=layer_cfgs)
    out_pad = pl.pallas_call(
        kernel,
        out_shape=jax.ShapeDtypeStruct((batch_pad, pad), jnp.float32),
        in_specs=[
            pl.BlockSpec(memory_space=pltpu.MemorySpace.VMEM),
            pl.BlockSpec(memory_space=pltpu.MemorySpace.VMEM),
            pl.BlockSpec(memory_space=pltpu.MemorySpace.VMEM),
        ],
        out_specs=pl.BlockSpec(memory_space=pltpu.MemorySpace.VMEM),
    )(x_pad, W, BGB)
    return out_pad[:batch, :num_outputs]


def _reference_forward(x, params, *, use_layer_norm, activation,
                       activation_final):
    """Pure-JAX reference for correctness checking."""
    acts = {
        "relu": lambda v: jnp.maximum(v, 0.0),
        "tanh": jnp.tanh,
        "sigmoid": jax.nn.sigmoid,
        "none": lambda v: v,
    }
    h = x
    n = len(params)
    for li, (w, b, g, be) in enumerate(params):
        is_last = li == n - 1
        y = jnp.dot(h, w, precision=jax.lax.Precision.HIGHEST) + b
        if use_layer_norm and not is_last:
            mean = jnp.mean(y, axis=-1, keepdims=True)
            var = jnp.mean((y - mean) ** 2, axis=-1, keepdims=True)
            y = (y - mean) * jax.lax.rsqrt(var + _LN_EPS) * g + be
        h = acts[activation_final if is_last else activation](y)
    return h


if __name__ == "__main__":
    # Small shapes consistent with the module: batch=8, num_inputs=32,
    # hidden_sizes=[64, 64], num_outputs=16.
    batch = 8
    num_inputs = 32
    hidden_sizes = [64, 64]
    num_outputs = 16

    key = jax.random.PRNGKey(0)
    key, kx = jax.random.split(key)
    x = jax.random.normal(kx, (batch, num_inputs), jnp.float32)

    params = init_mlp_params(key, num_inputs, hidden_sizes, num_outputs)

    out = network_forward(
        x, params,
        use_layer_norm=True,
        activation="relu",
        activation_final="tanh",
    )
    out = jax.block_until_ready(out)

    ref = _reference_forward(
        x, params,
        use_layer_norm=True,
        activation="relu",
        activation_final="tanh",
    )
    ref = jax.block_until_ready(ref)

    assert out.shape == (batch, num_outputs)
    assert bool(jnp.all(jnp.isfinite(out)))
    assert bool(jnp.allclose(out, ref, atol=1e-3, rtol=1e-3))
    print("KERNEL_OK")
</pallas_src>

<mosaic_0001>
module attributes {stable_mosaic.version = 11 : i64} {
  func.func @_fused_mlp_kernel(%arg0: memref<8x128xf32, #tpu.memory_space<vmem>>, %arg1: memref<3x128x128xf32, #tpu.memory_space<vmem>>, %arg2: memref<3x8x128xf32, #tpu.memory_space<vmem>>, %arg3: memref<8x128xf32, #tpu.memory_space<vmem>>) attributes {dimension_semantics = [], scalar_prefetch = 0 : i64, scratch_operands = 0 : i64, tpu.core_type = #tpu.core_type<tc>} {
    %c0 = arith.constant 0 : index
    %c0_0 = arith.constant 0 : index
    %0 = vector.load %arg0[%c0, %c0_0] : memref<8x128xf32, #tpu.memory_space<vmem>>, vector<8x128xf32>
    %c0_1 = arith.constant 0 : index
    %c0_2 = arith.constant 0 : index
    %c0_3 = arith.constant 0 : index
    %1 = vector.load %arg1[%c0_1, %c0_2, %c0_3] : memref<3x128x128xf32, #tpu.memory_space<vmem>>, vector<1x128x128xf32>
    %2 = vector.shape_cast %1 : vector<1x128x128xf32> to vector<128x128xf32>
    %c0_4 = arith.constant 0 : index
    %c0_5 = arith.constant 0 : index
    %c0_6 = arith.constant 0 : index
    %3 = vector.load %arg2[%c0_4, %c0_5, %c0_6] : memref<3x8x128xf32, #tpu.memory_space<vmem>>, vector<1x8x128xf32>
    %4 = vector.shape_cast %3 : vector<1x8x128xf32> to vector<8x128xf32>
    %5 = vector.extract_strided_slice %4 {offsets = [0, 0], sizes = [1, 128], strides = [1, 1]} : vector<8x128xf32> to vector<1x128xf32>
    %cst = arith.constant dense<0.000000e+00> : vector<8x128xf32>
    %6 = tpu.matmul %0, %2, %cst {dimension_numbers = #tpu.dot_dimension_numbers<[1], [0], [0], [1], [0, 0, 1, 1], [], []>, precision = #tpu.contract_precision<fp32>} : vector<8x128xf32>, vector<128x128xf32>, vector<8x128xf32> -> vector<8x128xf32>
    %7 = vector.broadcast %5 : vector<1x128xf32> to vector<8x128xf32>
    %8 = arith.addf %6, %7 : vector<8x128xf32>
    %9 = vector.extract_strided_slice %4 {offsets = [1, 0], sizes = [1, 128], strides = [1, 1]} : vector<8x128xf32> to vector<1x128xf32>
    %10 = vector.extract_strided_slice %4 {offsets = [2, 0], sizes = [1, 128], strides = [1, 1]} : vector<8x128xf32> to vector<1x128xf32>
    %cst_7 = arith.constant dense<0.000000e+00> : vector<8xf32>
    %11 = vector.multi_reduction <add>, %8, %cst_7 [1] : vector<8x128xf32> to vector<8xf32>
    %12 = vector.shape_cast %11 : vector<8xf32> to vector<8x1xf32>
    %cst_8 = arith.constant 1.562500e-02 : f32
    %13 = vector.broadcast %cst_8 : f32 to vector<8x1xf32>
    %14 = arith.mulf %12, %13 : vector<8x1xf32>
    %15 = arith.mulf %8, %8 : vector<8x128xf32>
    %cst_9 = arith.constant dense<0.000000e+00> : vector<8xf32>
    %16 = vector.multi_reduction <add>, %15, %cst_9 [1] : vector<8x128xf32> to vector<8xf32>
    %17 = vector.shape_cast %16 : vector<8xf32> to vector<8x1xf32>
    %cst_10 = arith.constant 1.562500e-02 : f32
    %18 = vector.broadcast %cst_10 : f32 to vector<8x1xf32>
    %19 = arith.mulf %17, %18 : vector<8x1xf32>
    %20 = arith.mulf %14, %14 : vector<8x1xf32>
    %21 = arith.subf %19, %20 : vector<8x1xf32>
    %cst_11 = arith.constant 9.99999974E-6 : f32
    %22 = vector.broadcast %cst_11 : f32 to vector<8x1xf32>
    %23 = arith.addf %21, %22 : vector<8x1xf32>
    %24 = math.rsqrt %23 : vector<8x1xf32>
    %25 = vector.broadcast %9 : vector<1x128xf32> to vector<8x128xf32>
    %26 = vector.broadcast %24 : vector<8x1xf32> to vector<8x128xf32>
    %27 = arith.mulf %25, %26 : vector<8x128xf32>
    %28 = vector.broadcast %14 : vector<8x1xf32> to vector<8x128xf32>
    %29 = arith.subf %8, %28 : vector<8x128xf32>
    %30 = arith.mulf %29, %27 : vector<8x128xf32>
    %31 = vector.broadcast %10 : vector<1x128xf32> to vector<8x128xf32>
    %32 = arith.addf %30, %31 : vector<8x128xf32>
    %cst_12 = arith.constant 0.000000e+00 : f32
    %33 = vector.broadcast %cst_12 : f32 to vector<8x128xf32>
    %34 = arith.maximumf %32, %33 : vector<8x128xf32>
    %c1 = arith.constant 1 : index
    %c0_13 = arith.constant 0 : index
    %c0_14 = arith.constant 0 : index
    %35 = vector.load %arg1[%c1, %c0_13, %c0_14] : memref<3x128x128xf32, #tpu.memory_space<vmem>>, vector<1x128x128xf32>
    %36 = vector.shape_cast %35 : vector<1x128x128xf32> to vector<128x128xf32>
    %c1_15 = arith.constant 1 : index
    %c0_16 = arith.constant 0 : index
    %c0_17 = arith.constant 0 : index
    %37 = vector.load %arg2[%c1_15, %c0_16, %c0_17] : memref<3x8x128xf32, #tpu.memory_space<vmem>>, vector<1x8x128xf32>
    %38 = vector.shape_cast %37 : vector<1x8x128xf32> to vector<8x128xf32>
    %39 = vector.extract_strided_slice %38 {offsets = [0, 0], sizes = [1, 128], strides = [1, 1]} : vector<8x128xf32> to vector<1x128xf32>
    %cst_18 = arith.constant dense<0.000000e+00> : vector<8x128xf32>
    %40 = tpu.matmul %34, %36, %cst_18 {dimension_numbers = #tpu.dot_dimension_numbers<[1], [0], [0], [1], [0, 0, 1, 1], [], []>, precision = #tpu.contract_precision<fp32>} : vector<8x128xf32>, vector<128x128xf32>, vector<8x128xf32> -> vector<8x128xf32>
    %41 = vector.broadcast %39 : vector<1x128xf32> to vector<8x128xf32>
    %42 = arith.addf %40, %41 : vector<8x128xf32>
    %43 = vector.extract_strided_slice %38 {offsets = [1, 0], sizes = [1, 128], strides = [1, 1]} : vector<8x128xf32> to vector<1x128xf32>
    %44 = vector.extract_strided_slice %38 {offsets = [2, 0], sizes = [1, 128], strides = [1, 1]} : vector<8x128xf32> to vector<1x128xf32>
    %cst_19 = arith.constant dense<0.000000e+00> : vector<8xf32>
    %45 = vector.multi_reduction <add>, %42, %cst_19 [1] : vector<8x128xf32> to vector<8xf32>
    %46 = vector.shape_cast %45 : vector<8xf32> to vector<8x1xf32>
    %cst_20 = arith.constant 1.562500e-02 : f32
    %47 = vector.broadcast %cst_20 : f32 to vector<8x1xf32>
    %48 = arith.mulf %46, %47 : vector<8x1xf32>
    %49 = arith.mulf %42, %42 : vector<8x128xf32>
    %cst_21 = arith.constant dense<0.000000e+00> : vector<8xf32>
    %50 = vector.multi_reduction <add>, %49, %cst_21 [1] : vector<8x128xf32> to vector<8xf32>
    %51 = vector.shape_cast %50 : vector<8xf32> to vector<8x1xf32>
    %cst_22 = arith.constant 1.562500e-02 : f32
    %52 = vector.broadcast %cst_22 : f32 to vector<8x1xf32>
    %53 = arith.mulf %51, %52 : vector<8x1xf32>
    %54 = arith.mulf %48, %48 : vector<8x1xf32>
    %55 = arith.subf %53, %54 : vector<8x1xf32>
    %cst_23 = arith.constant 9.99999974E-6 : f32
    %56 = vector.broadcast %cst_23 : f32 to vector<8x1xf32>
    %57 = arith.addf %55, %56 : vector<8x1xf32>
    %58 = math.rsqrt %57 : vector<8x1xf32>
    %59 = vector.broadcast %43 : vector<1x128xf32> to vector<8x128xf32>
    %60 = vector.broadcast %58 : vector<8x1xf32> to vector<8x128xf32>
    %61 = arith.mulf %59, %60 : vector<8x128xf32>
    %62 = vector.broadcast %48 : vector<8x1xf32> to vector<8x128xf32>
    %63 = arith.subf %42, %62 : vector<8x128xf32>
    %64 = arith.mulf %63, %61 : vector<8x128xf32>
    %65 = vector.broadcast %44 : vector<1x128xf32> to vector<8x128xf32>
    %66 = arith.addf %64, %65 : vector<8x128xf32>
    %cst_24 = arith.constant 0.000000e+00 : f32
    %67 = vector.broadcast %cst_24 : f32 to vector<8x128xf32>
    %68 = arith.maximumf %66, %67 : vector<8x128xf32>
    %c2 = arith.constant 2 : index
    %c0_25 = arith.constant 0 : index
    %c0_26 = arith.constant 0 : index
    %69 = vector.load %arg1[%c2, %c0_25, %c0_26] : memref<3x128x128xf32, #tpu.memory_space<vmem>>, vector<1x128x128xf32>
    %70 = vector.shape_cast %69 : vector<1x128x128xf32> to vector<128x128xf32>
    %c2_27 = arith.constant 2 : index
    %c0_28 = arith.constant 0 : index
    %c0_29 = arith.constant 0 : index
    %71 = vector.load %arg2[%c2_27, %c0_28, %c0_29] : memref<3x8x128xf32, #tpu.memory_space<vmem>>, vector<1x8x128xf32>
    %72 = vector.shape_cast %71 : vector<1x8x128xf32> to vector<8x128xf32>
    %73 = vector.extract_strided_slice %72 {offsets = [0, 0], sizes = [1, 128], strides = [1, 1]} : vector<8x128xf32> to vector<1x128xf32>
    %cst_30 = arith.constant dense<0.000000e+00> : vector<8x128xf32>
    %74 = tpu.matmul %68, %70, %cst_30 {dimension_numbers = #tpu.dot_dimension_numbers<[1], [0], [0], [1], [0, 0, 1, 1], [], []>, precision = #tpu.contract_precision<fp32>} : vector<8x128xf32>, vector<128x128xf32>, vector<8x128xf32> -> vector<8x128xf32>
    %75 = vector.broadcast %73 : vector<1x128xf32> to vector<8x128xf32>
    %76 = arith.addf %74, %75 : vector<8x128xf32>
    %77 = math.tanh %76 : vector<8x128xf32>
    %c0_31 = arith.constant 0 : index
    %c0_32 = arith.constant 0 : index
    %78 = vector.load %arg3[%c0_31, %c0_32] : memref<8x128xf32, #tpu.memory_space<vmem>>, vector<8x128xf32>
    tpu.vector_store %arg3[%c0_31, %c0_32], %77 {strides = array<i32>} : memref<8x128xf32, #tpu.memory_space<vmem>>, vector<8x128xf32>,
    return
  }
}

</mosaic_0001>

<llo_original>
// kernel: tpu_custom_call.1
$region0: #{tpu_custom_call.1}
  #allocation0 [shape = 'u32[]', space=smem, size = 0x4, offset = 0x4, fixed_abs, tag = 'smem constant byte address 0x4 - core index']
  #allocation1 [shape = 'u32[144,128]{1,0:T(1,128)}', space=vmem, size = 0x12000, scoped, tag = 'internal scratch']
  %s0 = inlined_call_operand.hbm [shape: f32[8,128], index: 0, kind: input, shape index: {}]
  %s1 = inlined_call_operand.hbm [shape: f32[3,128,128], index: 1, kind: input, shape index: {}]
  %s2 = inlined_call_operand.hbm [shape: f32[3,8,128], index: 2, kind: input, shape index: {}]
  %s3 = inlined_call_operand.hbm [shape: f32[8,128], index: 3, kind: output, shape index: {}]
  %s4 = sld [smem:[#allocation0]]
  $region34: #{tpu_custom_call.1} parent=0
    _
  %s6 = ssub.s32 1, %s4
  %s7 = scalar_select 0, %s6, %s4
  $region1: #{tpu_custom_call.1} parent=0
    #allocation2 [shape = 'u8[4096]{0}', space=vmem, size = 0x1000, scoped, tag = 'input window, operand 0, single buffered']
    #allocation3 [shape = 's32[1]{0}', space=sflag, size = 0x4, scoped, tag = 'scoped memory for tpu_custom_call.1']
    #allocation4 [shape = 's32[1]{0}', space=sflag, size = 0x4, scoped, tag = 'scoped memory for tpu_custom_call.1']
    #allocation5 [shape = 'u8[196608]{0}', space=vmem, size = 0x30000, scoped, tag = 'input window, operand 1, single buffered']
    #allocation6 [shape = 's32[1]{0}', space=sflag, size = 0x4, scoped, tag = 'scoped memory for tpu_custom_call.1']
    #allocation7 [shape = 'u8[12288]{0}', space=vmem, size = 0x3000, scoped, tag = 'input window, operand 2, single buffered']
    #allocation8 [shape = 'u8[4096]{0}', space=vmem, size = 0x1000, scoped, tag = 'output window, operand 0, single buffered']
    %8 = vsyncpa [#allocation3], 0
    %9 = vsyncpa [#allocation6], 0
    %10 = vsyncpa [#allocation4], 0
    // Predicated region
    $region2: #{tpu_custom_call.1} parent=1 // pred_check
      _
    $region3: #{tpu_custom_call.1} parent=1 // pred_check_branch
      %12 = sbr.rel (0) target = $region5
    $region4: #{tpu_custom_call.1} parent=1 // pred_region
      %s14 = ssub.s32 128, 128
      %15 = vsyncadd [#allocation3], %s14
      %s17 = sshll.u32 [#allocation2], 4
      %s18 = int_to_ptr.vmem [resolvable:$true] %s17
      %20 = dma.hbm_to_vmem [thread:$0]  %s0, 128, %s18, [#allocation3]
    $region5: #{tpu_custom_call.1} parent=1 // pred_fallthru
      _
    // Predicated region
    $region6: #{tpu_custom_call.1} parent=1 // pred_check
      _
    $region7: #{tpu_custom_call.1} parent=1 // pred_check_branch
      %22 = sbr.rel (0) target = $region9
    $region8: #{tpu_custom_call.1} parent=1 // pred_region
      %s24 = ssub.s32 6144, 6144
      %25 = vsyncadd [#allocation6], %s24
      %s26 = sshll.u32 [#allocation5], 4
      %s27 = int_to_ptr.vmem [resolvable:$true] %s26
      %32 = dma.hbm_to_vmem [thread:$0]  %s1, 6144, %s27, [#allocation6], 128, 128, 8
    $region9: #{tpu_custom_call.1} parent=1 // pred_fallthru
      _
    // Predicated region
    $region10: #{tpu_custom_call.1} parent=1 // pred_check
      _
    $region11: #{tpu_custom_call.1} parent=1 // pred_check_branch
      %34 = sbr.rel (0) target = $region13
    $region12: #{tpu_custom_call.1} parent=1 // pred_region
      %s36 = ssub.s32 384, 384
      %37 = vsyncadd [#allocation6], %s36
      %s38 = sshll.u32 [#allocation7], 4
      %s39 = int_to_ptr.vmem [resolvable:$true] %s38
      %44 = dma.hbm_to_vmem [thread:$0]  %s2, 384, %s39, [#allocation6], 128, 128, 8
    $region13: #{tpu_custom_call.1} parent=1 // pred_fallthru
      _
    // Predicated region
    $region14: #{tpu_custom_call.1} parent=1 // pred_check
      _
    $region15: #{tpu_custom_call.1} parent=1 // pred_check_branch
      %46 = sbr.rel (0) target = $region17
    $region16: #{tpu_custom_call.1} parent=1 // pred_region
      %47 = dma.done [#allocation3], 128
    $region17: #{tpu_custom_call.1} parent=1 // pred_fallthru
      _
    // Predicated region
    $region18: #{tpu_custom_call.1} parent=1 // pred_check
      _
    $region19: #{tpu_custom_call.1} parent=1 // pred_check_branch
      %49 = sbr.rel (0) target = $region21
    $region20: #{tpu_custom_call.1} parent=1 // pred_region
      %50 = dma.done [#allocation6], 6144
    $region21: #{tpu_custom_call.1} parent=1 // pred_fallthru
      _
    // Predicated region
    $region22: #{tpu_custom_call.1} parent=1 // pred_check
      _
    $region23: #{tpu_custom_call.1} parent=1 // pred_check_branch
      %52 = sbr.rel (0) target = $region25
    $region24: #{tpu_custom_call.1} parent=1 // pred_region
      %53 = dma.done [#allocation6], 384
    $region25: #{tpu_custom_call.1} parent=1 // pred_fallthru
      _
    %v54 = vld [vmem:[#allocation2] sm:$0xff]
    %v55 = vld [vmem:[#allocation5] sm:$0xff]
    %v56 = vld [vmem:[#allocation5 + $0x8] sm:$0xff]
    %v57 = vld [vmem:[#allocation5 + $0x10] sm:$0xff]
    %v58 = vld [vmem:[#allocation5 + $0x18] sm:$0xff]
    %v59 = vld [vmem:[#allocation5 + $0x20] sm:$0xff]
    %v60 = vld [vmem:[#allocation5 + $0x28] sm:$0xff]
    %v61 = vld [vmem:[#allocation5 + $0x30] sm:$0xff]
    %v62 = vld [vmem:[#allocation5 + $0x38] sm:$0xff]
    %v63 = vld [vmem:[#allocation5 + $0x40] sm:$0xff]
    %v64 = vld [vmem:[#allocation5 + $0x48] sm:$0xff]
    %v65 = vld [vmem:[#allocation5 + $0x50] sm:$0xff]
    %v66 = vld [vmem:[#allocation5 + $0x58] sm:$0xff]
    %v67 = vld [vmem:[#allocation5 + $0x60] sm:$0xff]
    %v68 = vld [vmem:[#allocation5 + $0x68] sm:$0xff]
    %v69 = vld [vmem:[#allocation5 + $0x70] sm:$0xff]
    %v70 = vld [vmem:[#allocation5 + $0x78] sm:$0xff]
    %v71 = vld [vmem:[#allocation7] sm:$0xff]
    %v72 = vlaneseq
    %v73 = vshrl.u32 %v72, 7
    %v74 = vsub.s32 0, %v73
    %v75 = vrot.slane %v71, %v74
    %76 = vmatprep.subr.mxu0 0.0
    %v77 = vand.u32 %v55, 4294901760
    %78 = vmatpush1.msra.mxu0 %v77
    %79 = vmatprep.subr.mxu0 0.0
    %v80 = vand.u32 %v56, 4294901760
    %81 = vmatpush1.msra.mxu0 %v80
    %82 = vmatprep.subr.mxu0 0.0
    %v83 = vand.u32 %v57, 4294901760
    %84 = vmatpush1.msra.mxu0 %v83
    %85 = vmatprep.subr.mxu0 0.0
    %v86 = vand.u32 %v58, 4294901760
    %87 = vmatpush1.msra.mxu0 %v86
    %88 = vmatprep.subr.mxu0 0.0
    %v89 = vand.u32 %v59, 4294901760
    %90 = vmatpush1.msra.mxu0 %v89
    %91 = vmatprep.subr.mxu0 0.0
    %v92 = vand.u32 %v60, 4294901760
    %93 = vmatpush1.msra.mxu0 %v92
    %94 = vmatprep.subr.mxu0 0.0
    %v95 = vand.u32 %v61, 4294901760
    %96 = vmatpush1.msra.mxu0 %v95
    %97 = vmatprep.subr.mxu0 0.0
    %v98 = vand.u32 %v62, 4294901760
    %99 = vmatpush1.msra.mxu0 %v98
    %100 = vmatprep.subr.mxu0 0.0
    %v101 = vand.u32 %v63, 4294901760
    %102 = vmatpush1.msra.mxu0 %v101
    %103 = vmatprep.subr.mxu0 0.0
    %v104 = vand.u32 %v64, 4294901760
    %105 = vmatpush1.msra.mxu0 %v104
    %106 = vmatprep.subr.mxu0 0.0
    %v107 = vand.u32 %v65, 4294901760
    %108 = vmatpush1.msra.mxu0 %v107
    %109 = vmatprep.subr.mxu0 0.0
    %v110 = vand.u32 %v66, 4294901760
    %111 = vmatpush1.msra.mxu0 %v110
    %112 = vmatprep.subr.mxu0 0.0
    %v113 = vand.u32 %v67, 4294901760
    %114 = vmatpush1.msra.mxu0 %v113
    %115 = vmatprep.subr.mxu0 0.0
    %v116 = vand.u32 %v68, 4294901760
    %117 = vmatpush1.msra.mxu0 %v116
    %118 = vmatprep.subr.mxu0 0.0
    %v119 = vand.u32 %v69, 4294901760
    %120 = vmatpush1.msra.mxu0 %v119
    %121 = vmatprep.subr.mxu0 0.0
    %v122 = vand.u32 %v70, 4294901760
    %123 = vmatpush1.msra.mxu0 %v122
    %124 = vmatprep.subr.mxu0 0.0
    %125 = vmatpush1.msra.mxu0 0.0
    %126 = vmatprep.subr.mxu0 0.0
    %127 = vmatpush1.msra.mxu0 0.0
    %128 = vmatprep.subr.mxu0 0.0
    %129 = vmatpush1.msra.mxu0 0.0
    %130 = vmatprep.subr.mxu0 0.0
    %131 = vmatpush1.msra.mxu0 0.0
    %132 = vmatprep.subr.mxu0 0.0
    %133 = vmatpush1.msra.mxu0 0.0
    %134 = vmatprep.subr.mxu0 0.0
    %135 = vmatpush1.msra.mxu0 0.0
    %136 = vmatprep.subr.mxu0 0.0
    %137 = vmatpush1.msra.mxu0 0.0
    %138 = vmatprep.subr.mxu0 0.0
    %139 = vmatpush1.msra.mxu0 0.0
    %140 = vmatprep.subr.mxu0 0.0
    %141 = vmatpush1.msra.mxu0 0.0
    %142 = vmatprep.subr.mxu0 0.0
    %143 = vmatpush1.msra.mxu0 0.0
    %144 = vmatprep.subr.mxu0 0.0
    %145 = vmatpush1.msra.mxu0 0.0
    %146 = vmatprep.subr.mxu0 0.0
    %147 = vmatpush1.msra.mxu0 0.0
    %148 = vmatprep.subr.mxu0 0.0
    %149 = vmatpush1.msra.mxu0 0.0
    %150 = vmatprep.subr.mxu0 0.0
    %151 = vmatpush1.msra.mxu0 0.0
    %152 = vmatprep.subr.mxu0 0.0
    %153 = vmatpush1.msra.mxu0 0.0
    %154 = vmatprep.subr.mxu0 0.0
    %155 = vmatpush1.msra.mxu0 0.0
    %156 = vmatprep.mubr.f32.mxu0 0.0
    %v157 = vand.u32 %v54, 4294901760
    %v158 = vsub.f32 %v54, %v157
    %v159 = vand.u32 %v158, 4294901760
    %v160 = vsub.f32 %v158, %v159
    %v161 = vand.u32 %v160, 4294901760
    %162 = vmatmul.mubr.f32.gmra.mrb[0].mxu0 %v161
    %v163 = vpop.f32.mrb[0].mxu0
    %v164 = vadd.f32 %v75, %v163
    %v165 = vpop.f32.mrb[0].mxu0
    %166 = vdwg.mxu0
    %167 = vmatprep.subr.mxu0 0.0
    %v168 = vand.u32 %v55, 4294901760
    %v169 = vsub.f32 %v55, %v168
    %v170 = vand.u32 %v169, 4294901760
    %v171 = vsub.f32 %v169, %v170
    %v172 = vand.u32 %v171, 4294901760
    %173 = vmatpush1.msra.mxu0 %v172
    %174 = vmatprep.subr.mxu0 0.0
    %v175 = vand.u32 %v56, 4294901760
    %v176 = vsub.f32 %v56, %v175
    %v177 = vand.u32 %v176, 4294901760
    %v178 = vsub.f32 %v176, %v177
    %v179 = vand.u32 %v178, 4294901760
    %180 = vmatpush1.msra.mxu0 %v179
    %181 = vmatprep.subr.mxu0 0.0
    %v182 = vand.u32 %v57, 4294901760
    %v183 = vsub.f32 %v57, %v182
    %v184 = vand.u32 %v183, 4294901760
    %v185 = vsub.f32 %v183, %v184
    %v186 = vand.u32 %v185, 4294901760
    %187 = vmatpush1.msra.mxu0 %v186
    %188 = vmatprep.subr.mxu0 0.0
    %v189 = vand.u32 %v58, 4294901760
    %v190 = vsub.f32 %v58, %v189
    %v191 = vand.u32 %v190, 4294901760
    %v192 = vsub.f32 %v190, %v191
    %v193 = vand.u32 %v192, 4294901760
    %194 = vmatpush1.msra.mxu0 %v193
    %195 = vmatprep.subr.mxu0 0.0
    %v196 = vand.u32 %v59, 4294901760
    %v197 = vsub.f32 %v59, %v196
    %v198 = vand.u32 %v197, 4294901760
    %v199 = vsub.f32 %v197, %v198
    %v200 = vand.u32 %v199, 4294901760
    %201 = vmatpush1.msra.mxu0 %v200
    %202 = vmatprep.subr.mxu0 0.0
    %v203 = vand.u32 %v60, 4294901760
    %v204 = vsub.f32 %v60, %v203
    %v205 = vand.u32 %v204, 4294901760
    %v206 = vsub.f32 %v204, %v205
    %v207 = vand.u32 %v206, 4294901760
    %208 = vmatpush1.msra.mxu0 %v207
    %209 = vmatprep.subr.mxu0 0.0
    %v210 = vand.u32 %v61, 4294901760
    %v211 = vsub.f32 %v61, %v210
    %v212 = vand.u32 %v211, 4294901760
    %v213 = vsub.f32 %v211, %v212
    %v214 = vand.u32 %v213, 4294901760
    %215 = vmatpush1.msra.mxu0 %v214
    %216 = vmatprep.subr.mxu0 0.0
    %v217 = vand.u32 %v62, 4294901760
    %v218 = vsub.f32 %v62, %v217
    %v219 = vand.u32 %v218, 4294901760
    %v220 = vsub.f32 %v218, %v219
    %v221 = vand.u32 %v220, 4294901760
    %222 = vmatpush1.msra.mxu0 %v221
    %223 = vmatprep.subr.mxu0 0.0
    %v224 = vand.u32 %v63, 4294901760
    %v225 = vsub.f32 %v63, %v224
    %v226 = vand.u32 %v225, 4294901760
    %v227 = vsub.f32 %v225, %v226
    %v228 = vand.u32 %v227, 4294901760
    %229 = vmatpush1.msra.mxu0 %v228
    %230 = vmatprep.subr.mxu0 0.0
    %v231 = vand.u32 %v64, 4294901760
    %v232 = vsub.f32 %v64, %v231
    %v233 = vand.u32 %v232, 4294901760
    %v234 = vsub.f32 %v232, %v233
    %v235 = vand.u32 %v234, 4294901760
    %236 = vmatpush1.msra.mxu0 %v235
    %237 = vmatprep.subr.mxu0 0.0
    %v238 = vand.u32 %v65, 4294901760
    %v239 = vsub.f32 %v65, %v238
    %v240 = vand.u32 %v239, 4294901760
    %v241 = vsub.f32 %v239, %v240
    %v242 = vand.u32 %v241, 4294901760
    %243 = vmatpush1.msra.mxu0 %v242
    %244 = vmatprep.subr.mxu0 0.0
    %v245 = vand.u32 %v66, 4294901760
    %v246 = vsub.f32 %v66, %v245
    %v247 = vand.u32 %v246, 4294901760
    %v248 = vsub.f32 %v246, %v247
    %v249 = vand.u32 %v248, 4294901760
    %250 = vmatpush1.msra.mxu0 %v249
    %251 = vmatprep.subr.mxu0 0.0
    %v252 = vand.u32 %v67, 4294901760
    %v253 = vsub.f32 %v67, %v252
    %v254 = vand.u32 %v253, 4294901760
    %v255 = vsub.f32 %v253, %v254
    %v256 = vand.u32 %v255, 4294901760
    %257 = vmatpush1.msra.mxu0 %v256
    %258 = vmatprep.subr.mxu0 0.0
    %v259 = vand.u32 %v68, 4294901760
    %v260 = vsub.f32 %v68, %v259
    %v261 = vand.u32 %v260, 4294901760
    %v262 = vsub.f32 %v260, %v261
    %v263 = vand.u32 %v262, 4294901760
    %264 = vmatpush1.msra.mxu0 %v263
    %265 = vmatprep.subr.mxu0 0.0
    %v266 = vand.u32 %v69, 4294901760
    %v267 = vsub.f32 %v69, %v266
    %v268 = vand.u32 %v267, 4294901760
    %v269 = vsub.f32 %v267, %v268
    %v270 = vand.u32 %v269, 4294901760
    %271 = vmatpush1.msra.mxu0 %v270
    %272 = vmatprep.subr.mxu0 0.0
    %v273 = vand.u32 %v70, 4294901760
    %v274 = vsub.f32 %v70, %v273
    %v275 = vand.u32 %v274, 4294901760
    %v276 = vsub.f32 %v274, %v275
    %v277 = vand.u32 %v276, 4294901760
    %278 = vmatpush1.msra.mxu0 %v277
    %279 = vmatprep.subr.mxu0 0.0
    %280 = vmatpush1.msra.mxu0 0.0
    %281 = vmatprep.subr.mxu0 0.0
    %282 = vmatpush1.msra.mxu0 0.0
    %283 = vmatprep.subr.mxu0 0.0
    %284 = vmatpush1.msra.mxu0 0.0
    %285 = vmatprep.subr.mxu0 0.0
    %286 = vmatpush1.msra.mxu0 0.0
    %287 = vmatprep.subr.mxu0 0.0
    %288 = vmatpush1.msra.mxu0 0.0
    %289 = vmatprep.subr.mxu0 0.0
    %290 = vmatpush1.msra.mxu0 0.0
    %291 = vmatprep.subr.mxu0 0.0
    %292 = vmatpush1.msra.mxu0 0.0
    %293 = vmatprep.subr.mxu0 0.0
    %294 = vmatpush1.msra.mxu0 0.0
    %295 = vmatprep.subr.mxu0 0.0
    %296 = vmatpush1.msra.mxu0 0.0
    %297 = vmatprep.subr.mxu0 0.0
    %298 = vmatpush1.msra.mxu0 0.0
    %299 = vmatprep.subr.mxu0 0.0
    %300 = vmatpush1.msra.mxu0 0.0
    %301 = vmatprep.subr.mxu0 0.0
    %302 = vmatpush1.msra.mxu0 0.0
    %303 = vmatprep.subr.mxu0 0.0
    %304 = vmatpush1.msra.mxu0 0.0
    %305 = vmatprep.subr.mxu0 0.0
    %306 = vmatpush1.msra.mxu0 0.0
    %307 = vmatprep.subr.mxu0 0.0
    %308 = vmatpush1.msra.mxu0 0.0
    %309 = vmatprep.subr.mxu0 0.0
    %310 = vmatpush1.msra.mxu0 0.0
    %311 = vmatprep.mubr.f32.mxu0 0.0
    %v312 = vand.u32 %v54, 4294901760
    %313 = vmatmul.mubr.f32.gmra.mrb[0].mxu0 %v312
    %v314 = vpop.f32.mrb[0].mxu0
    %v315 = vadd.f32 %v164, %v314
    %v316 = vpop.f32.mrb[0].mxu0
    %317 = vdwg.mxu0
    %318 = vmatprep.subr.mxu0 0.0
    %v319 = vand.u32 %v55, 4294901760
    %v320 = vsub.f32 %v55, %v319
    %321 = vmatpush1.msra.mxu0 %v320
    %322 = vmatprep.subr.mxu0 0.0
    %v323 = vand.u32 %v56, 4294901760
    %v324 = vsub.f32 %v56, %v323
    %325 = vmatpush1.msra.mxu0 %v324
    %326 = vmatprep.subr.mxu0 0.0
    %v327 = vand.u32 %v57, 4294901760
    %v328 = vsub.f32 %v57, %v327
    %329 = vmatpush1.msra.mxu0 %v328
    %330 = vmatprep.subr.mxu0 0.0
    %v331 = vand.u32 %v58, 4294901760
    %v332 = vsub.f32 %v58, %v331
    %333 = vmatpush1.msra.mxu0 %v332
    %334 = vmatprep.subr.mxu0 0.0
    %v335 = vand.u32 %v59, 4294901760
    %v336 = vsub.f32 %v59, %v335
    %337 = vmatpush1.msra.mxu0 %v336
    %338 = vmatprep.subr.mxu0 0.0
    %v339 = vand.u32 %v60, 4294901760
    %v340 = vsub.f32 %v60, %v339
    %341 = vmatpush1.msra.mxu0 %v340
    %342 = vmatprep.subr.mxu0 0.0
    %v343 = vand.u32 %v61, 4294901760
    %v344 = vsub.f32 %v61, %v343
    %345 = vmatpush1.msra.mxu0 %v344
    %346 = vmatprep.subr.mxu0 0.0
    %v347 = vand.u32 %v62, 4294901760
    %v348 = vsub.f32 %v62, %v347
    %349 = vmatpush1.msra.mxu0 %v348
    %350 = vmatprep.subr.mxu0 0.0
    %v351 = vand.u32 %v63, 4294901760
    %v352 = vsub.f32 %v63, %v351
    %353 = vmatpush1.msra.mxu0 %v352
    %354 = vmatprep.subr.mxu0 0.0
    %v355 = vand.u32 %v64, 4294901760
    %v356 = vsub.f32 %v64, %v355
    %357 = vmatpush1.msra.mxu0 %v356
    %358 = vmatprep.subr.mxu0 0.0
    %v359 = vand.u32 %v65, 4294901760
    %v360 = vsub.f32 %v65, %v359
    %361 = vmatpush1.msra.mxu0 %v360
    %362 = vmatprep.subr.mxu0 0.0
    %v363 = vand.u32 %v66, 4294901760
    %v364 = vsub.f32 %v66, %v363
    %365 = vmatpush1.msra.mxu0 %v364
    %366 = vmatprep.subr.mxu0 0.0
    %v367 = vand.u32 %v67, 4294901760
    %v368 = vsub.f32 %v67, %v367
    %369 = vmatpush1.msra.mxu0 %v368
    %370 = vmatprep.subr.mxu0 0.0
    %v371 = vand.u32 %v68, 4294901760
    %v372 = vsub.f32 %v68, %v371
    %373 = vmatpush1.msra.mxu0 %v372
    %374 = vmatprep.subr.mxu0 0.0
    %v375 = vand.u32 %v69, 4294901760
    %v376 = vsub.f32 %v69, %v375
    %377 = vmatpush1.msra.mxu0 %v376
    %378 = vmatprep.subr.mxu0 0.0
    %v379 = vand.u32 %v70, 4294901760
    %v380 = vsub.f32 %v70, %v379
    %381 = vmatpush1.msra.mxu0 %v380
    %382 = vmatprep.subr.mxu0 0.0
    %383 = vmatpush1.msra.mxu0 0.0
    %384 = vmatprep.subr.mxu0 0.0
    %385 = vmatpush1.msra.mxu0 0.0
    %386 = vmatprep.subr.mxu0 0.0
    %387 = vmatpush1.msra.mxu0 0.0
    %388 = vmatprep.subr.mxu0 0.0
    %389 = vmatpush1.msra.mxu0 0.0
    %390 = vmatprep.subr.mxu0 0.0
    %391 = vmatpush1.msra.mxu0 0.0
    %392 = vmatprep.subr.mxu0 0.0
    %393 = vmatpush1.msra.mxu0 0.0
    %394 = vmatprep.subr.mxu0 0.0
    %395 = vmatpush1.msra.mxu0 0.0
    %396 = vmatprep.subr.mxu0 0.0
    %397 = vmatpush1.msra.mxu0 0.0
    %398 = vmatprep.subr.mxu0 0.0
    %399 = vmatpush1.msra.mxu0 0.0
    %400 = vmatprep.subr.mxu0 0.0
    %401 = vmatpush1.msra.mxu0 0.0
    %402 = vmatprep.subr.mxu0 0.0
    %403 = vmatpush1.msra.mxu0 0.0
    %404 = vmatprep.subr.mxu0 0.0
    %405 = vmatpush1.msra.mxu0 0.0
    %406 = vmatprep.subr.mxu0 0.0
    %407 = vmatpush1.msra.mxu0 0.0
    %408 = vmatprep.subr.mxu0 0.0
    %409 = vmatpush1.msra.mxu0 0.0
    %410 = vmatprep.subr.mxu0 0.0
    %411 = vmatpush1.msra.mxu0 0.0
    %412 = vmatprep.subr.mxu0 0.0
    %413 = vmatpush1.msra.mxu0 0.0
    %414 = vmatprep.mubr.f32.mxu0 0.0
    %v415 = vand.u32 %v54, 4294901760
    %v416 = vsub.f32 %v54, %v415
    %417 = vmatmul.mubr.f32.gmra.mrb[0].mxu0 %v416
    %v418 = vpop.f32.mrb[0].mxu0
    %v419 = vadd.f32 %v315, %v418
    %v420 = vpop.f32.mrb[0].mxu0
    %421 = vdwg.mxu0
    %422 = vmatprep.subr.mxu0 0.0
    %v423 = vand.u32 %v55, 4294901760
    %424 = vmatpush1.msra.mxu0 %v423
    %425 = vmatprep.subr.mxu0 0.0
    %v426 = vand.u32 %v56, 4294901760
    %427 = vmatpush1.msra.mxu0 %v426
    %428 = vmatprep.subr.mxu0 0.0
    %v429 = vand.u32 %v57, 4294901760
    %430 = vmatpush1.msra.mxu0 %v429
    %431 = vmatprep.subr.mxu0 0.0
    %v432 = vand.u32 %v58, 4294901760
    %433 = vmatpush1.msra.mxu0 %v432
    %434 = vmatprep.subr.mxu0 0.0
    %v435 = vand.u32 %v59, 4294901760
    %436 = vmatpush1.msra.mxu0 %v435
    %437 = vmatprep.subr.mxu0 0.0
    %v438 = vand.u32 %v60, 4294901760
    %439 = vmatpush1.msra.mxu0 %v438
    %440 = vmatprep.subr.mxu0 0.0
    %v441 = vand.u32 %v61, 4294901760
    %442 = vmatpush1.msra.mxu0 %v441
    %443 = vmatprep.subr.mxu0 0.0
    %v444 = vand.u32 %v62, 4294901760
    %445 = vmatpush1.msra.mxu0 %v444
    %446 = vmatprep.subr.mxu0 0.0
    %v447 = vand.u32 %v63, 4294901760
    %448 = vmatpush1.msra.mxu0 %v447
    %449 = vmatprep.subr.mxu0 0.0
    %v450 = vand.u32 %v64, 4294901760
    %451 = vmatpush1.msra.mxu0 %v450
    %452 = vmatprep.subr.mxu0 0.0
    %v453 = vand.u32 %v65, 4294901760
    %454 = vmatpush1.msra.mxu0 %v453
    %455 = vmatprep.subr.mxu0 0.0
    %v456 = vand.u32 %v66, 4294901760
    %457 = vmatpush1.msra.mxu0 %v456
    %458 = vmatprep.subr.mxu0 0.0
    %v459 = vand.u32 %v67, 4294901760
    %460 = vmatpush1.msra.mxu0 %v459
    %461 = vmatprep.subr.mxu0 0.0
    %v462 = vand.u32 %v68, 4294901760
    %463 = vmatpush1.msra.mxu0 %v462
    %464 = vmatprep.subr.mxu0 0.0
    %v465 = vand.u32 %v69, 4294901760
    %466 = vmatpush1.msra.mxu0 %v465
    %467 = vmatprep.subr.mxu0 0.0
    %v468 = vand.u32 %v70, 4294901760
    %469 = vmatpush1.msra.mxu0 %v468
    %470 = vmatprep.subr.mxu0 0.0
    %471 = vmatpush1.msra.mxu0 0.0
    %472 = vmatprep.subr.mxu0 0.0
    %473 = vmatpush1.msra.mxu0 0.0
    %474 = vmatprep.subr.mxu0 0.0
    %475 = vmatpush1.msra.mxu0 0.0
    %476 = vmatprep.subr.mxu0 0.0
    %477 = vmatpush1.msra.mxu0 0.0
    %478 = vmatprep.subr.mxu0 0.0
    %479 = vmatpush1.msra.mxu0 0.0
    %480 = vmatprep.subr.mxu0 0.0
    %481 = vmatpush1.msra.mxu0 0.0
    %482 = vmatprep.subr.mxu0 0.0
    %483 = vmatpush1.msra.mxu0 0.0
    %484 = vmatprep.subr.mxu0 0.0
    %485 = vmatpush1.msra.mxu0 0.0
    %486 = vmatprep.subr.mxu0 0.0
    %487 = vmatpush1.msra.mxu0 0.0
    %488 = vmatprep.subr.mxu0 0.0
    %489 = vmatpush1.msra.mxu0 0.0
    %490 = vmatprep.subr.mxu0 0.0
    %491 = vmatpush1.msra.mxu0 0.0
    %492 = vmatprep.subr.mxu0 0.0
    %493 = vmatpush1.msra.mxu0 0.0
    %494 = vmatprep.subr.mxu0 0.0
    %495 = vmatpush1.msra.mxu0 0.0
    %496 = vmatprep.subr.mxu0 0.0
    %497 = vmatpush1.msra.mxu0 0.0
    %498 = vmatprep.subr.mxu0 0.0
    %499 = vmatpush1.msra.mxu0 0.0
    %500 = vmatprep.subr.mxu0 0.0
    %501 = vmatpush1.msra.mxu0 0.0
    %502 = vmatprep.mubr.f32.mxu0 0.0
    %v503 = vand.u32 %v54, 4294901760
    %v504 = vsub.f32 %v54, %v503
    %v505 = vand.u32 %v504, 4294901760
    %506 = vmatmul.mubr.f32.gmra.mrb[0].mxu0 %v505
    %v507 = vpop.f32.mrb[0].mxu0
    %v508 = vadd.f32 %v419, %v507
    %v509 = vpop.f32.mrb[0].mxu0
    %510 = vdwg.mxu0
    %511 = vmatprep.subr.mxu0 0.0
    %v512 = vand.u32 %v55, 4294901760
    %v513 = vsub.f32 %v55, %v512
    %v514 = vand.u32 %v513, 4294901760
    %515 = vmatpush1.msra.mxu0 %v514
    %516 = vmatprep.subr.mxu0 0.0
    %v517 = vand.u32 %v56, 4294901760
    %v518 = vsub.f32 %v56, %v517
    %v519 = vand.u32 %v518, 4294901760
    %520 = vmatpush1.msra.mxu0 %v519
    %521 = vmatprep.subr.mxu0 0.0
    %v522 = vand.u32 %v57, 4294901760
    %v523 = vsub.f32 %v57, %v522
    %v524 = vand.u32 %v523, 4294901760
    %525 = vmatpush1.msra.mxu0 %v524
    %526 = vmatprep.subr.mxu0 0.0
    %v527 = vand.u32 %v58, 4294901760
    %v528 = vsub.f32 %v58, %v527
    %v529 = vand.u32 %v528, 4294901760
    %530 = vmatpush1.msra.mxu0 %v529
    %531 = vmatprep.subr.mxu0 0.0
    %v532 = vand.u32 %v59, 4294901760
    %v533 = vsub.f32 %v59, %v532
    %v534 = vand.u32 %v533, 4294901760
    %535 = vmatpush1.msra.mxu0 %v534
    %536 = vmatprep.subr.mxu0 0.0
    %v537 = vand.u32 %v60, 4294901760
    %v538 = vsub.f32 %v60, %v537
    %v539 = vand.u32 %v538, 4294901760
    %540 = vmatpush1.msra.mxu0 %v539
    %541 = vmatprep.subr.mxu0 0.0
    %v542 = vand.u32 %v61, 4294901760
    %v543 = vsub.f32 %v61, %v542
    %v544 = vand.u32 %v543, 4294901760
    %545 = vmatpush1.msra.mxu0 %v544
    %546 = vmatprep.subr.mxu0 0.0
    %v547 = vand.u32 %v62, 4294901760
    %v548 = vsub.f32 %v62, %v547
    %v549 = vand.u32 %v548, 4294901760
    %550 = vmatpush1.msra.mxu0 %v549
    %551 = vmatprep.subr.mxu0 0.0
    %v552 = vand.u32 %v63, 4294901760
    %v553 = vsub.f32 %v63, %v552
    %v554 = vand.u32 %v553, 4294901760
    %555 = vmatpush1.msra.mxu0 %v554
    %556 = vmatprep.subr.mxu0 0.0
    %v557 = vand.u32 %v64, 4294901760
    %v558 = vsub.f32 %v64, %v557
    %v559 = vand.u32 %v558, 4294901760
    %560 = vmatpush1.msra.mxu0 %v559
    %561 = vmatprep.subr.mxu0 0.0
    %v562 = vand.u32 %v65, 4294901760
    %v563 = vsub.f32 %v65, %v562
    %v564 = vand.u32 %v563, 4294901760
    %565 = vmatpush1.msra.mxu0 %v564
    %566 = vmatprep.subr.mxu0 0.0
    %v567 = vand.u32 %v66, 4294901760
    %v568 = vsub.f32 %v66, %v567
    %v569 = vand.u32 %v568, 4294901760
    %570 = vmatpush1.msra.mxu0 %v569
    %571 = vmatprep.subr.mxu0 0.0
    %v572 = vand.u32 %v67, 4294901760
    %v573 = vsub.f32 %v67, %v572
    %v574 = vand.u32 %v573, 4294901760
    %575 = vmatpush1.msra.mxu0 %v574
    %576 = vmatprep.subr.mxu0 0.0
    %v577 = vand.u32 %v68, 4294901760
    %v578 = vsub.f32 %v68, %v577
    %v579 = vand.u32 %v578, 4294901760
    %580 = vmatpush1.msra.mxu0 %v579
    %581 = vmatprep.subr.mxu0 0.0
    %v582 = vand.u32 %v69, 4294901760
    %v583 = vsub.f32 %v69, %v582
    %v584 = vand.u32 %v583, 4294901760
    %585 = vmatpush1.msra.mxu0 %v584
    %586 = vmatprep.subr.mxu0 0.0
    %v587 = vand.u32 %v70, 4294901760
    %v588 = vsub.f32 %v70, %v587
    %v589 = vand.u32 %v588, 4294901760
    %590 = vmatpush1.msra.mxu0 %v589
    %591 = vmatprep.subr.mxu0 0.0
    %592 = vmatpush1.msra.mxu0 0.0
    %593 = vmatprep.subr.mxu0 0.0
    %594 = vmatpush1.msra.mxu0 0.0
    %595 = vmatprep.subr.mxu0 0.0
    %596 = vmatpush1.msra.mxu0 0.0
    %597 = vmatprep.subr.mxu0 0.0
    %598 = vmatpush1.msra.mxu0 0.0
    %599 = vmatprep.subr.mxu0 0.0
    %600 = vmatpush1.msra.mxu0 0.0
    %601 = vmatprep.subr.mxu0 0.0
    %602 = vmatpush1.msra.mxu0 0.0
    %603 = vmatprep.subr.mxu0 0.0
    %604 = vmatpush1.msra.mxu0 0.0
    %605 = vmatprep.subr.mxu0 0.0
    %606 = vmatpush1.msra.mxu0 0.0
    %607 = vmatprep.subr.mxu0 0.0
    %608 = vmatpush1.msra.mxu0 0.0
    %609 = vmatprep.subr.mxu0 0.0
    %610 = vmatpush1.msra.mxu0 0.0
    %611 = vmatprep.subr.mxu0 0.0
    %612 = vmatpush1.msra.mxu0 0.0
    %613 = vmatprep.subr.mxu0 0.0
    %614 = vmatpush1.msra.mxu0 0.0
    %615 = vmatprep.subr.mxu0 0.0
    %616 = vmatpush1.msra.mxu0 0.0
    %617 = vmatprep.subr.mxu0 0.0
    %618 = vmatpush1.msra.mxu0 0.0
    %619 = vmatprep.subr.mxu0 0.0
    %620 = vmatpush1.msra.mxu0 0.0
    %621 = vmatprep.subr.mxu0 0.0
    %622 = vmatpush1.msra.mxu0 0.0
    %623 = vmatprep.mubr.f32.mxu0 0.0
    %v624 = vand.u32 %v54, 4294901760
    %625 = vmatmul.mubr.f32.gmra.mrb[0].mxu0 %v624
    %v626 = vpop.f32.mrb[0].mxu0
    %v627 = vadd.f32 %v508, %v626
    %v628 = vpop.f32.mrb[0].mxu0
    %629 = vdwg.mxu0
    %630 = vmatprep.subr.mxu0 0.0
    %v631 = vand.u32 %v55, 4294901760
    %632 = vmatpush1.msra.mxu0 %v631
    %633 = vmatprep.subr.mxu0 0.0
    %v634 = vand.u32 %v56, 4294901760
    %635 = vmatpush1.msra.mxu0 %v634
    %636 = vmatprep.subr.mxu0 0.0
    %v637 = vand.u32 %v57, 4294901760
    %638 = vmatpush1.msra.mxu0 %v637
    %639 = vmatprep.subr.mxu0 0.0
    %v640 = vand.u32 %v58, 4294901760
    %641 = vmatpush1.msra.mxu0 %v640
    %642 = vmatprep.subr.mxu0 0.0
    %v643 = vand.u32 %v59, 4294901760
    %644 = vmatpush1.msra.mxu0 %v643
    %645 = vmatprep.subr.mxu0 0.0
    %v646 = vand.u32 %v60, 4294901760
    %647 = vmatpush1.msra.mxu0 %v646
    %648 = vmatprep.subr.mxu0 0.0
    %v649 = vand.u32 %v61, 4294901760
    %650 = vmatpush1.msra.mxu0 %v649
    %651 = vmatprep.subr.mxu0 0.0
    %v652 = vand.u32 %v62, 4294901760
    %653 = vmatpush1.msra.mxu0 %v652
    %654 = vmatprep.subr.mxu0 0.0
    %v655 = vand.u32 %v63, 4294901760
    %656 = vmatpush1.msra.mxu0 %v655
    %657 = vmatprep.subr.mxu0 0.0
    %v658 = vand.u32 %v64, 4294901760
    %659 = vmatpush1.msra.mxu0 %v658
    %660 = vmatprep.subr.mxu0 0.0
    %v661 = vand.u32 %v65, 4294901760
    %662 = vmatpush1.msra.mxu0 %v661
    %663 = vmatprep.subr.mxu0 0.0
    %v664 = vand.u32 %v66, 4294901760
    %665 = vmatpush1.msra.mxu0 %v664
    %666 = vmatprep.subr.mxu0 0.0
    %v667 = vand.u32 %v67, 4294901760
    %668 = vmatpush1.msra.mxu0 %v667
    %669 = vmatprep.subr.mxu0 0.0
    %v670 = vand.u32 %v68, 4294901760
    %671 = vmatpush1.msra.mxu0 %v670
    %672 = vmatprep.subr.mxu0 0.0
    %v673 = vand.u32 %v69, 4294901760
    %674 = vmatpush1.msra.mxu0 %v673
    %675 = vmatprep.subr.mxu0 0.0
    %v676 = vand.u32 %v70, 4294901760
    %677 = vmatpush1.msra.mxu0 %v676
    %678 = vmatprep.subr.mxu0 0.0
    %679 = vmatpush1.msra.mxu0 0.0
    %680 = vmatprep.subr.mxu0 0.0
    %681 = vmatpush1.msra.mxu0 0.0
    %682 = vmatprep.subr.mxu0 0.0
    %683 = vmatpush1.msra.mxu0 0.0
    %684 = vmatprep.subr.mxu0 0.0
    %685 = vmatpush1.msra.mxu0 0.0
    %686 = vmatprep.subr.mxu0 0.0
    %687 = vmatpush1.msra.mxu0 0.0
    %688 = vmatprep.subr.mxu0 0.0
    %689 = vmatpush1.msra.mxu0 0.0
    %690 = vmatprep.subr.mxu0 0.0
    %691 = vmatpush1.msra.mxu0 0.0
    %692 = vmatprep.subr.mxu0 0.0
    %693 = vmatpush1.msra.mxu0 0.0
    %694 = vmatprep.subr.mxu0 0.0
    %695 = vmatpush1.msra.mxu0 0.0
    %696 = vmatprep.subr.mxu0 0.0
    %697 = vmatpush1.msra.mxu0 0.0
    %698 = vmatprep.subr.mxu0 0.0
    %699 = vmatpush1.msra.mxu0 0.0
    %700 = vmatprep.subr.mxu0 0.0
    %701 = vmatpush1.msra.mxu0 0.0
    %702 = vmatprep.subr.mxu0 0.0
    %703 = vmatpush1.msra.mxu0 0.0
    %704 = vmatprep.subr.mxu0 0.0
    %705 = vmatpush1.msra.mxu0 0.0
    %706 = vmatprep.subr.mxu0 0.0
    %707 = vmatpush1.msra.mxu0 0.0
    %708 = vmatprep.subr.mxu0 0.0
    %709 = vmatpush1.msra.mxu0 0.0
    %710 = vmatprep.mubr.f32.mxu0 0.0
    %v711 = vand.u32 %v54, 4294901760
    %712 = vmatmul.mubr.f32.gmra.mrb[0].mxu0 %v711
    %v713 = vpop.f32.mrb[0].mxu0
    %v714 = vadd.f32 %v627, %v713
    %v715 = vpop.f32.mrb[0].mxu0
    %716 = vdwg.mxu0
    %717 = vadd.xlane.f32.xlu0 %v714
    %v718 = vpop.xlane.xlu0 %717
    %v719 = vmul.f32 %v718, 0.015625
    %v720 = vmul.f32 %v714, %v714
    %721 = vadd.xlane.f32.xlu0 %v720
    %v722 = vpop.xlane.xlu0 %721
    %v723 = vmul.f32 %v722, 0.015625
    %v724 = vmul.f32 %v719, %v719
    %v725 = vsub.f32 %v723, %v724
    %v726 = vadd.f32 %v725, 1e-05
    %v727 = vrsqrt.pop %v726
    %v728 = vlaneseq
    %v729 = vshrl.u32 %v728, 7
    %v730 = vsub.s32 1, %v729
    %v731 = vrot.slane %v71, %v730
    %v732 = vmul.f32 %v731, %v727
    %v733 = vsub.f32 %v714, %v719
    %v734 = vmul.f32 %v733, %v732
    %v735 = vlaneseq
    %v736 = vshrl.u32 %v735, 7
    %v737 = vsub.s32 2, %v736
    %v738 = vrot.slane %v71, %v737
    %v739 = vadd.f32 %v734, %v738
    %v740 = vmax.f32 %v739, 0.0
    %s741 = scalar_lea.vmem [#allocation5], 128
    %v742 = vld [vmem:[%s741] sm:$0xff]
    %v743 = vld [vmem:[%s741 + $0x8] sm:$0xff]
    %v744 = vld [vmem:[%s741 + $0x10] sm:$0xff]
    %v745 = vld [vmem:[%s741 + $0x18] sm:$0xff]
    %v746 = vld [vmem:[%s741 + $0x20] sm:$0xff]
    %v747 = vld [vmem:[%s741 + $0x28] sm:$0xff]
    %v748 = vld [vmem:[%s741 + $0x30] sm:$0xff]
    %v749 = vld [vmem:[%s741 + $0x38] sm:$0xff]
    %v750 = vld [vmem:[%s741 + $0x40] sm:$0xff]
    %v751 = vld [vmem:[%s741 + $0x48] sm:$0xff]
    %v752 = vld [vmem:[%s741 + $0x50] sm:$0xff]
    %v753 = vld [vmem:[%s741 + $0x58] sm:$0xff]
    %v754 = vld [vmem:[%s741 + $0x60] sm:$0xff]
    %v755 = vld [vmem:[%s741 + $0x68] sm:$0xff]
    %v756 = vld [vmem:[%s741 + $0x70] sm:$0xff]
    %v757 = vld [vmem:[%s741 + $0x78] sm:$0xff]
    %s758 = scalar_lea.vmem [#allocation7], 8
    %v759 = vld [vmem:[%s758] sm:$0xff]
    %v760 = vlaneseq
    %v761 = vshrl.u32 %v760, 7
    %v762 = vsub.s32 0, %v761
    %v763 = vrot.slane %v759, %v762
    %764 = vmatprep.subr.mxu0 0.0
    %v765 = vand.u32 %v742, 4294901760
    %766 = vmatpush1.msra.mxu0 %v765
    %767 = vmatprep.subr.mxu0 0.0
    %v768 = vand.u32 %v743, 4294901760
    %769 = vmatpush1.msra.mxu0 %v768
    %770 = vmatprep.subr.mxu0 0.0
    %v771 = vand.u32 %v744, 4294901760
    %772 = vmatpush1.msra.mxu0 %v771
    %773 = vmatprep.subr.mxu0 0.0
    %v774 = vand.u32 %v745, 4294901760
    %775 = vmatpush1.msra.mxu0 %v774
    %776 = vmatprep.subr.mxu0 0.0
    %v777 = vand.u32 %v746, 4294901760
    %778 = vmatpush1.msra.mxu0 %v777
    %779 = vmatprep.subr.mxu0 0.0
    %v780 = vand.u32 %v747, 4294901760
    %781 = vmatpush1.msra.mxu0 %v780
    %782 = vmatprep.subr.mxu0 0.0
    %v783 = vand.u32 %v748, 4294901760
    %784 = vmatpush1.msra.mxu0 %v783
    %785 = vmatprep.subr.mxu0 0.0
    %v786 = vand.u32 %v749, 4294901760
    %787 = vmatpush1.msra.mxu0 %v786
    %788 = vmatprep.subr.mxu0 0.0
    %v789 = vand.u32 %v750, 4294901760
    %790 = vmatpush1.msra.mxu0 %v789
    %791 = vmatprep.subr.mxu0 0.0
    %v792 = vand.u32 %v751, 4294901760
    %793 = vmatpush1.msra.mxu0 %v792
    %794 = vmatprep.subr.mxu0 0.0
    %v795 = vand.u32 %v752, 4294901760
    %796 = vmatpush1.msra.mxu0 %v795
    %797 = vmatprep.subr.mxu0 0.0
    %v798 = vand.u32 %v753, 4294901760
    %799 = vmatpush1.msra.mxu0 %v798
    %800 = vmatprep.subr.mxu0 0.0
    %v801 = vand.u32 %v754, 4294901760
    %802 = vmatpush1.msra.mxu0 %v801
    %803 = vmatprep.subr.mxu0 0.0
    %v804 = vand.u32 %v755, 4294901760
    %805 = vmatpush1.msra.mxu0 %v804
    %806 = vmatprep.subr.mxu0 0.0
    %v807 = vand.u32 %v756, 4294901760
    %808 = vmatpush1.msra.mxu0 %v807
    %809 = vmatprep.subr.mxu0 0.0
    %v810 = vand.u32 %v757, 4294901760
    %811 = vmatpush1.msra.mxu0 %v810
    %812 = vmatprep.subr.mxu0 0.0
    %813 = vmatpush1.msra.mxu0 0.0
    %814 = vmatprep.subr.mxu0 0.0
    %815 = vmatpush1.msra.mxu0 0.0
    %816 = vmatprep.subr.mxu0 0.0
    %817 = vmatpush1.msra.mxu0 0.0
    %818 = vmatprep.subr.mxu0 0.0
    %819 = vmatpush1.msra.mxu0 0.0
    %820 = vmatprep.subr.mxu0 0.0
    %821 = vmatpush1.msra.mxu0 0.0
    %822 = vmatprep.subr.mxu0 0.0
    %823 = vmatpush1.msra.mxu0 0.0
    %824 = vmatprep.subr.mxu0 0.0
    %825 = vmatpush1.msra.mxu0 0.0
    %826 = vmatprep.subr.mxu0 0.0
    %827 = vmatpush1.msra.mxu0 0.0
    %828 = vmatprep.subr.mxu0 0.0
    %829 = vmatpush1.msra.mxu0 0.0
    %830 = vmatprep.subr.mxu0 0.0
    %831 = vmatpush1.msra.mxu0 0.0
    %832 = vmatprep.subr.mxu0 0.0
    %833 = vmatpush1.msra.mxu0 0.0
    %834 = vmatprep.subr.mxu0 0.0
    %835 = vmatpush1.msra.mxu0 0.0
    %836 = vmatprep.subr.mxu0 0.0
    %837 = vmatpush1.msra.mxu0 0.0
    %838 = vmatprep.subr.mxu0 0.0
    %839 = vmatpush1.msra.mxu0 0.0
    %840 = vmatprep.subr.mxu0 0.0
    %841 = vmatpush1.msra.mxu0 0.0
    %842 = vmatprep.subr.mxu0 0.0
    %843 = vmatpush1.msra.mxu0 0.0
    %844 = vmatprep.mubr.f32.mxu0 0.0
    %v845 = vand.u32 %v740, 4294901760
    %v846 = vsub.f32 %v740, %v845
    %v847 = vand.u32 %v846, 4294901760
    %v848 = vsub.f32 %v846, %v847
    %v849 = vand.u32 %v848, 4294901760
    %850 = vmatmul.mubr.f32.gmra.mrb[0].mxu0 %v849
    %v851 = vpop.f32.mrb[0].mxu0
    %v852 = vadd.f32 %v763, %v851
    %v853 = vpop.f32.mrb[0].mxu0
    %854 = vdwg.mxu0
    %855 = vmatprep.subr.mxu0 0.0
    %v856 = vand.u32 %v742, 4294901760
    %v857 = vsub.f32 %v742, %v856
    %v858 = vand.u32 %v857, 4294901760
    %v859 = vsub.f32 %v857, %v858
    %v860 = vand.u32 %v859, 4294901760
    %861 = vmatpush1.msra.mxu0 %v860
    %862 = vmatprep.subr.mxu0 0.0
    %v863 = vand.u32 %v743, 4294901760
    %v864 = vsub.f32 %v743, %v863
    %v865 = vand.u32 %v864, 4294901760
    %v866 = vsub.f32 %v864, %v865
    %v867 = vand.u32 %v866, 4294901760
    %868 = vmatpush1.msra.mxu0 %v867
    %869 = vmatprep.subr.mxu0 0.0
    %v870 = vand.u32 %v744, 4294901760
    %v871 = vsub.f32 %v744, %v870
    %v872 = vand.u32 %v871, 4294901760
    %v873 = vsub.f32 %v871, %v872
    %v874 = vand.u32 %v873, 4294901760
    %875 = vmatpush1.msra.mxu0 %v874
    %876 = vmatprep.subr.mxu0 0.0
    %v877 = vand.u32 %v745, 4294901760
    %v878 = vsub.f32 %v745, %v877
    %v879 = vand.u32 %v878, 4294901760
    %v880 = vsub.f32 %v878, %v879
    %v881 = vand.u32 %v880, 4294901760
    %882 = vmatpush1.msra.mxu0 %v881
    %883 = vmatprep.subr.mxu0 0.0
    %v884 = vand.u32 %v746, 4294901760
    %v885 = vsub.f32 %v746, %v884
    %v886 = vand.u32 %v885, 4294901760
    %v887 = vsub.f32 %v885, %v886
    %v888 = vand.u32 %v887, 4294901760
    %889 = vmatpush1.msra.mxu0 %v888
    %890 = vmatprep.subr.mxu0 0.0
    %v891 = vand.u32 %v747, 4294901760
    %v892 = vsub.f32 %v747, %v891
    %v893 = vand.u32 %v892, 4294901760
    %v894 = vsub.f32 %v892, %v893
    %v895 = vand.u32 %v894, 4294901760
    %896 = vmatpush1.msra.mxu0 %v895
    %897 = vmatprep.subr.mxu0 0.0
    %v898 = vand.u32 %v748, 4294901760
    %v899 = vsub.f32 %v748, %v898
    %v900 = vand.u32 %v899, 4294901760
    %v901 = vsub.f32 %v899, %v900
    %v902 = vand.u32 %v901, 4294901760
    %903 = vmatpush1.msra.mxu0 %v902
    %904 = vmatprep.subr.mxu0 0.0
    %v905 = vand.u32 %v749, 4294901760
    %v906 = vsub.f32 %v749, %v905
    %v907 = vand.u32 %v906, 4294901760
    %v908 = vsub.f32 %v906, %v907
    %v909 = vand.u32 %v908, 4294901760
    %910 = vmatpush1.msra.mxu0 %v909
    %911 = vmatprep.subr.mxu0 0.0
    %v912 = vand.u32 %v750, 4294901760
    %v913 = vsub.f32 %v750, %v912
    %v914 = vand.u32 %v913, 4294901760
    %v915 = vsub.f32 %v913, %v914
    %v916 = vand.u32 %v915, 4294901760
    %917 = vmatpush1.msra.mxu0 %v916
    %918 = vmatprep.subr.mxu0 0.0
    %v919 = vand.u32 %v751, 4294901760
    %v920 = vsub.f32 %v751, %v919
    %v921 = vand.u32 %v920, 4294901760
    %v922 = vsub.f32 %v920, %v921
    %v923 = vand.u32 %v922, 4294901760
    %924 = vmatpush1.msra.mxu0 %v923
    %925 = vmatprep.subr.mxu0 0.0
    %v926 = vand.u32 %v752, 4294901760
    %v927 = vsub.f32 %v752, %v926
    %v928 = vand.u32 %v927, 4294901760
    %v929 = vsub.f32 %v927, %v928
    %v930 = vand.u32 %v929, 4294901760
    %931 = vmatpush1.msra.mxu0 %v930
    %932 = vmatprep.subr.mxu0 0.0
    %v933 = vand.u32 %v753, 4294901760
    %v934 = vsub.f32 %v753, %v933
    %v935 = vand.u32 %v934, 4294901760
    %v936 = vsub.f32 %v934, %v935
    %v937 = vand.u32 %v936, 4294901760
    %938 = vmatpush1.msra.mxu0 %v937
    %939 = vmatprep.subr.mxu0 0.0
    %v940 = vand.u32 %v754, 4294901760
    %v941 = vsub.f32 %v754, %v940
    %v942 = vand.u32 %v941, 4294901760
    %v943 = vsub.f32 %v941, %v942
    %v944 = vand.u32 %v943, 4294901760
    %945 = vmatpush1.msra.mxu0 %v944
    %946 = vmatprep.subr.mxu0 0.0
    %v947 = vand.u32 %v755, 4294901760
    %v948 = vsub.f32 %v755, %v947
    %v949 = vand.u32 %v948, 4294901760
    %v950 = vsub.f32 %v948, %v949
    %v951 = vand.u32 %v950, 4294901760
    %952 = vmatpush1.msra.mxu0 %v951
    %953 = vmatprep.subr.mxu0 0.0
    %v954 = vand.u32 %v756, 4294901760
    %v955 = vsub.f32 %v756, %v954
    %v956 = vand.u32 %v955, 4294901760
    %v957 = vsub.f32 %v955, %v956
    %v958 = vand.u32 %v957, 4294901760
    %959 = vmatpush1.msra.mxu0 %v958
    %960 = vmatprep.subr.mxu0 0.0
    %v961 = vand.u32 %v757, 4294901760
    %v962 = vsub.f32 %v757, %v961
    %v963 = vand.u32 %v962, 4294901760
    %v964 = vsub.f32 %v962, %v963
    %v965 = vand.u32 %v964, 4294901760
    %966 = vmatpush1.msra.mxu0 %v965
    %967 = vmatprep.subr.mxu0 0.0
    %968 = vmatpush1.msra.mxu0 0.0
    %969 = vmatprep.subr.mxu0 0.0
    %970 = vmatpush1.msra.mxu0 0.0
    %971 = vmatprep.subr.mxu0 0.0
    %972 = vmatpush1.msra.mxu0 0.0
    %973 = vmatprep.subr.mxu0 0.0
    %974 = vmatpush1.msra.mxu0 0.0
    %975 = vmatprep.subr.mxu0 0.0
    %976 = vmatpush1.msra.mxu0 0.0
    %977 = vmatprep.subr.mxu0 0.0
    %978 = vmatpush1.msra.mxu0 0.0
    %979 = vmatprep.subr.mxu0 0.0
    %980 = vmatpush1.msra.mxu0 0.0
    %981 = vmatprep.subr.mxu0 0.0
    %982 = vmatpush1.msra.mxu0 0.0
    %983 = vmatprep.subr.mxu0 0.0
    %984 = vmatpush1.msra.mxu0 0.0
    %985 = vmatprep.subr.mxu0 0.0
    %986 = vmatpush1.msra.mxu0 0.0
    %987 = vmatprep.subr.mxu0 0.0
    %988 = vmatpush1.msra.mxu0 0.0
    %989 = vmatprep.subr.mxu0 0.0
    %990 = vmatpush1.msra.mxu0 0.0
    %991 = vmatprep.subr.mxu0 0.0
    %992 = vmatpush1.msra.mxu0 0.0
    %993 = vmatprep.subr.mxu0 0.0
    %994 = vmatpush1.msra.mxu0 0.0
    %995 = vmatprep.subr.mxu0 0.0
    %996 = vmatpush1.msra.mxu0 0.0
    %997 = vmatprep.subr.mxu0 0.0
    %998 = vmatpush1.msra.mxu0 0.0
    %999 = vmatprep.mubr.f32.mxu0 0.0
    %v1000 = vand.u32 %v740, 4294901760
    %1001 = vmatmul.mubr.f32.gmra.mrb[0].mxu0 %v1000
    %v1002 = vpop.f32.mrb[0].mxu0
    %v1003 = vadd.f32 %v852, %v1002
    %v1004 = vpop.f32.mrb[0].mxu0
    %1005 = vdwg.mxu0
    %1006 = vmatprep.subr.mxu0 0.0
    %v1007 = vand.u32 %v742, 4294901760
    %v1008 = vsub.f32 %v742, %v1007
    %1009 = vmatpush1.msra.mxu0 %v1008
    %1010 = vmatprep.subr.mxu0 0.0
    %v1011 = vand.u32 %v743, 4294901760
    %v1012 = vsub.f32 %v743, %v1011
    %1013 = vmatpush1.msra.mxu0 %v1012
    %1014 = vmatprep.subr.mxu0 0.0
    %v1015 = vand.u32 %v744, 4294901760
    %v1016 = vsub.f32 %v744, %v1015
    %1017 = vmatpush1.msra.mxu0 %v1016
    %1018 = vmatprep.subr.mxu0 0.0
    %v1019 = vand.u32 %v745, 4294901760
    %v1020 = vsub.f32 %v745, %v1019
    %1021 = vmatpush1.msra.mxu0 %v1020
    %1022 = vmatprep.subr.mxu0 0.0
    %v1023 = vand.u32 %v746, 4294901760
    %v1024 = vsub.f32 %v746, %v1023
    %1025 = vmatpush1.msra.mxu0 %v1024
    %1026 = vmatprep.subr.mxu0 0.0
    %v1027 = vand.u32 %v747, 4294901760
    %v1028 = vsub.f32 %v747, %v1027
    %1029 = vmatpush1.msra.mxu0 %v1028
    %1030 = vmatprep.subr.mxu0 0.0
    %v1031 = vand.u32 %v748, 4294901760
    %v1032 = vsub.f32 %v748, %v1031
    %1033 = vmatpush1.msra.mxu0 %v1032
    %1034 = vmatprep.subr.mxu0 0.0
    %v1035 = vand.u32 %v749, 4294901760
    %v1036 = vsub.f32 %v749, %v1035
    %1037 = vmatpush1.msra.mxu0 %v1036
    %1038 = vmatprep.subr.mxu0 0.0
    %v1039 = vand.u32 %v750, 4294901760
    %v1040 = vsub.f32 %v750, %v1039
    %1041 = vmatpush1.msra.mxu0 %v1040
    %1042 = vmatprep.subr.mxu0 0.0
    %v1043 = vand.u32 %v751, 4294901760
    %v1044 = vsub.f32 %v751, %v1043
    %1045 = vmatpush1.msra.mxu0 %v1044
    %1046 = vmatprep.subr.mxu0 0.0
    %v1047 = vand.u32 %v752, 4294901760
    %v1048 = vsub.f32 %v752, %v1047
    %1049 = vmatpush1.msra.mxu0 %v1048
    %1050 = vmatprep.subr.mxu0 0.0
    %v1051 = vand.u32 %v753, 4294901760
    %v1052 = vsub.f32 %v753, %v1051
    %1053 = vmatpush1.msra.mxu0 %v1052
    %1054 = vmatprep.subr.mxu0 0.0
    %v1055 = vand.u32 %v754, 4294901760
    %v1056 = vsub.f32 %v754, %v1055
    %1057 = vmatpush1.msra.mxu0 %v1056
    %1058 = vmatprep.subr.mxu0 0.0
    %v1059 = vand.u32 %v755, 4294901760
    %v1060 = vsub.f32 %v755, %v1059
    %1061 = vmatpush1.msra.mxu0 %v1060
    %1062 = vmatprep.subr.mxu0 0.0
    %v1063 = vand.u32 %v756, 4294901760
    %v1064 = vsub.f32 %v756, %v1063
    %1065 = vmatpush1.msra.mxu0 %v1064
    %1066 = vmatprep.subr.mxu0 0.0
    %v1067 = vand.u32 %v757, 4294901760
    %v1068 = vsub.f32 %v757, %v1067
    %1069 = vmatpush1.msra.mxu0 %v1068
    %1070 = vmatprep.subr.mxu0 0.0
    %1071 = vmatpush1.msra.mxu0 0.0
    %1072 = vmatprep.subr.mxu0 0.0
    %1073 = vmatpush1.msra.mxu0 0.0
    %1074 = vmatprep.subr.mxu0 0.0
    %1075 = vmatpush1.msra.mxu0 0.0
    %1076 = vmatprep.subr.mxu0 0.0
    %1077 = vmatpush1.msra.mxu0 0.0
    %1078 = vmatprep.subr.mxu0 0.0
    %1079 = vmatpush1.msra.mxu0 0.0
    %1080 = vmatprep.subr.mxu0 0.0
    %1081 = vmatpush1.msra.mxu0 0.0
    %1082 = vmatprep.subr.mxu0 0.0
    %1083 = vmatpush1.msra.mxu0 0.0
    %1084 = vmatprep.subr.mxu0 0.0
    %1085 = vmatpush1.msra.mxu0 0.0
    %1086 = vmatprep.subr.mxu0 0.0
    %1087 = vmatpush1.msra.mxu0 0.0
    %1088 = vmatprep.subr.mxu0 0.0
    %1089 = vmatpush1.msra.mxu0 0.0
    %1090 = vmatprep.subr.mxu0 0.0
    %1091 = vmatpush1.msra.mxu0 0.0
    %1092 = vmatprep.subr.mxu0 0.0
    %1093 = vmatpush1.msra.mxu0 0.0
    %1094 = vmatprep.subr.mxu0 0.0
    %1095 = vmatpush1.msra.mxu0 0.0
    %1096 = vmatprep.subr.mxu0 0.0
    %1097 = vmatpush1.msra.mxu0 0.0
    %1098 = vmatprep.subr.mxu0 0.0
    %1099 = vmatpush1.msra.mxu0 0.0
    %1100 = vmatprep.subr.mxu0 0.0
    %1101 = vmatpush1.msra.mxu0 0.0
    %1102 = vmatprep.mubr.f32.mxu0 0.0
    %v1103 = vand.u32 %v740, 4294901760
    %v1104 = vsub.f32 %v740, %v1103
    %1105 = vmatmul.mubr.f32.gmra.mrb[0].mxu0 %v1104
    %v1106 = vpop.f32.mrb[0].mxu0
    %v1107 = vadd.f32 %v1003, %v1106
    %v1108 = vpop.f32.mrb[0].mxu0
    %1109 = vdwg.mxu0
    %1110 = vmatprep.subr.mxu0 0.0
    %v1111 = vand.u32 %v742, 4294901760
    %1112 = vmatpush1.msra.mxu0 %v1111
    %1113 = vmatprep.subr.mxu0 0.0
    %v1114 = vand.u32 %v743, 4294901760
    %1115 = vmatpush1.msra.mxu0 %v1114
    %1116 = vmatprep.subr.mxu0 0.0
    %v1117 = vand.u32 %v744, 4294901760
    %1118 = vmatpush1.msra.mxu0 %v1117
    %1119 = vmatprep.subr.mxu0 0.0
    %v1120 = vand.u32 %v745, 4294901760
    %1121 = vmatpush1.msra.mxu0 %v1120
    %1122 = vmatprep.subr.mxu0 0.0
    %v1123 = vand.u32 %v746, 4294901760
    %1124 = vmatpush1.msra.mxu0 %v1123
    %1125 = vmatprep.subr.mxu0 0.0
    %v1126 = vand.u32 %v747, 4294901760
    %1127 = vmatpush1.msra.mxu0 %v1126
    %1128 = vmatprep.subr.mxu0 0.0
    %v1129 = vand.u32 %v748, 4294901760
    %1130 = vmatpush1.msra.mxu0 %v1129
    %1131 = vmatprep.subr.mxu0 0.0
    %v1132 = vand.u32 %v749, 4294901760
    %1133 = vmatpush1.msra.mxu0 %v1132
    %1134 = vmatprep.subr.mxu0 0.0
    %v1135 = vand.u32 %v750, 4294901760
    %1136 = vmatpush1.msra.mxu0 %v1135
    %1137 = vmatprep.subr.mxu0 0.0
    %v1138 = vand.u32 %v751, 4294901760
    %1139 = vmatpush1.msra.mxu0 %v1138
    %1140 = vmatprep.subr.mxu0 0.0
    %v1141 = vand.u32 %v752, 4294901760
    %1142 = vmatpush1.msra.mxu0 %v1141
    %1143 = vmatprep.subr.mxu0 0.0
    %v1144 = vand.u32 %v753, 4294901760
    %1145 = vmatpush1.msra.mxu0 %v1144
    %1146 = vmatprep.subr.mxu0 0.0
    %v1147 = vand.u32 %v754, 4294901760
    %1148 = vmatpush1.msra.mxu0 %v1147
    %1149 = vmatprep.subr.mxu0 0.0
    %v1150 = vand.u32 %v755, 4294901760
    %1151 = vmatpush1.msra.mxu0 %v1150
    %1152 = vmatprep.subr.mxu0 0.0
    %v1153 = vand.u32 %v756, 4294901760
    %1154 = vmatpush1.msra.mxu0 %v1153
    %1155 = vmatprep.subr.mxu0 0.0
    %v1156 = vand.u32 %v757, 4294901760
    %1157 = vmatpush1.msra.mxu0 %v1156
    %1158 = vmatprep.subr.mxu0 0.0
    %1159 = vmatpush1.msra.mxu0 0.0
    %1160 = vmatprep.subr.mxu0 0.0
    %1161 = vmatpush1.msra.mxu0 0.0
    %1162 = vmatprep.subr.mxu0 0.0
    %1163 = vmatpush1.msra.mxu0 0.0
    %1164 = vmatprep.subr.mxu0 0.0
    %1165 = vmatpush1.msra.mxu0 0.0
    %1166 = vmatprep.subr.mxu0 0.0
    %1167 = vmatpush1.msra.mxu0 0.0
    %1168 = vmatprep.subr.mxu0 0.0
    %1169 = vmatpush1.msra.mxu0 0.0
    %1170 = vmatprep.subr.mxu0 0.0
    %1171 = vmatpush1.msra.mxu0 0.0
    %1172 = vmatprep.subr.mxu0 0.0
    %1173 = vmatpush1.msra.mxu0 0.0
    %1174 = vmatprep.subr.mxu0 0.0
    %1175 = vmatpush1.msra.mxu0 0.0
    %1176 = vmatprep.subr.mxu0 0.0
    %1177 = vmatpush1.msra.mxu0 0.0
    %1178 = vmatprep.subr.mxu0 0.0
    %1179 = vmatpush1.msra.mxu0 0.0
    %1180 = vmatprep.subr.mxu0 0.0
    %1181 = vmatpush1.msra.mxu0 0.0
    %1182 = vmatprep.subr.mxu0 0.0
    %1183 = vmatpush1.msra.mxu0 0.0
    %1184 = vmatprep.subr.mxu0 0.0
    %1185 = vmatpush1.msra.mxu0 0.0
    %1186 = vmatprep.subr.mxu0 0.0
    %1187 = vmatpush1.msra.mxu0 0.0
    %1188 = vmatprep.subr.mxu0 0.0
    %1189 = vmatpush1.msra.mxu0 0.0
    %1190 = vmatprep.mubr.f32.mxu0 0.0
    %v1191 = vand.u32 %v740, 4294901760
    %v1192 = vsub.f32 %v740, %v1191
    %v1193 = vand.u32 %v1192, 4294901760
    %1194 = vmatmul.mubr.f32.gmra.mrb[0].mxu0 %v1193
    %v1195 = vpop.f32.mrb[0].mxu0
    %v1196 = vadd.f32 %v1107, %v1195
    %v1197 = vpop.f32.mrb[0].mxu0
    %1198 = vdwg.mxu0
    %1199 = vmatprep.subr.mxu0 0.0
    %v1200 = vand.u32 %v742, 4294901760
    %v1201 = vsub.f32 %v742, %v1200
    %v1202 = vand.u32 %v1201, 4294901760
    %1203 = vmatpush1.msra.mxu0 %v1202
    %1204 = vmatprep.subr.mxu0 0.0
    %v1205 = vand.u32 %v743, 4294901760
    %v1206 = vsub.f32 %v743, %v1205
    %v1207 = vand.u32 %v1206, 4294901760
    %1208 = vmatpush1.msra.mxu0 %v1207
    %1209 = vmatprep.subr.mxu0 0.0
    %v1210 = vand.u32 %v744, 4294901760
    %v1211 = vsub.f32 %v744, %v1210
    %v1212 = vand.u32 %v1211, 4294901760
    %1213 = vmatpush1.msra.mxu0 %v1212
    %1214 = vmatprep.subr.mxu0 0.0
    %v1215 = vand.u32 %v745, 4294901760
    %v1216 = vsub.f32 %v745, %v1215
    %v1217 = vand.u32 %v1216, 4294901760
    %1218 = vmatpush1.msra.mxu0 %v1217
    %1219 = vmatprep.subr.mxu0 0.0
    %v1220 = vand.u32 %v746, 4294901760
    %v1221 = vsub.f32 %v746, %v1220
    %v1222 = vand.u32 %v1221, 4294901760
    %1223 = vmatpush1.msra.mxu0 %v1222
    %1224 = vmatprep.subr.mxu0 0.0
    %v1225 = vand.u32 %v747, 4294901760
    %v1226 = vsub.f32 %v747, %v1225
    %v1227 = vand.u32 %v1226, 4294901760
    %1228 = vmatpush1.msra.mxu0 %v1227
    %1229 = vmatprep.subr.mxu0 0.0
    %v1230 = vand.u32 %v748, 4294901760
    %v1231 = vsub.f32 %v748, %v1230
    %v1232 = vand.u32 %v1231, 4294901760
    %1233 = vmatpush1.msra.mxu0 %v1232
    %1234 = vmatprep.subr.mxu0 0.0
    %v1235 = vand.u32 %v749, 4294901760
    %v1236 = vsub.f32 %v749, %v1235
    %v1237 = vand.u32 %v1236, 4294901760
    %1238 = vmatpush1.msra.mxu0 %v1237
    %1239 = vmatprep.subr.mxu0 0.0
    %v1240 = vand.u32 %v750, 4294901760
    %v1241 = vsub.f32 %v750, %v1240
    %v1242 = vand.u32 %v1241, 4294901760
    %1243 = vmatpush1.msra.mxu0 %v1242
    %1244 = vmatprep.subr.mxu0 0.0
    %v1245 = vand.u32 %v751, 4294901760
    %v1246 = vsub.f32 %v751, %v1245
    %v1247 = vand.u32 %v1246, 4294901760
    %1248 = vmatpush1.msra.mxu0 %v1247
    %1249 = vmatprep.subr.mxu0 0.0
    %v1250 = vand.u32 %v752, 4294901760
    %v1251 = vsub.f32 %v752, %v1250
    %v1252 = vand.u32 %v1251, 4294901760
    %1253 = vmatpush1.msra.mxu0 %v1252
    %1254 = vmatprep.subr.mxu0 0.0
    %v1255 = vand.u32 %v753, 4294901760
    %v1256 = vsub.f32 %v753, %v1255
    %v1257 = vand.u32 %v1256, 4294901760
    %1258 = vmatpush1.msra.mxu0 %v1257
    %1259 = vmatprep.subr.mxu0 0.0
    %v1260 = vand.u32 %v754, 4294901760
    %v1261 = vsub.f32 %v754, %v1260
    %v1262 = vand.u32 %v1261, 4294901760
    %1263 = vmatpush1.msra.mxu0 %v1262
    %1264 = vmatprep.subr.mxu0 0.0
    %v1265 = vand.u32 %v755, 4294901760
    %v1266 = vsub.f32 %v755, %v1265
    %v1267 = vand.u32 %v1266, 4294901760
    %1268 = vmatpush1.msra.mxu0 %v1267
    %1269 = vmatprep.subr.mxu0 0.0
    %v1270 = vand.u32 %v756, 4294901760
    %v1271 = vsub.f32 %v756, %v1270
    %v1272 = vand.u32 %v1271, 4294901760
    %1273 = vmatpush1.msra.mxu0 %v1272
    %1274 = vmatprep.subr.mxu0 0.0
    %v1275 = vand.u32 %v757, 4294901760
    %v1276 = vsub.f32 %v757, %v1275
    %v1277 = vand.u32 %v1276, 4294901760
    %1278 = vmatpush1.msra.mxu0 %v1277
    %1279 = vmatprep.subr.mxu0 0.0
    %1280 = vmatpush1.msra.mxu0 0.0
    %1281 = vmatprep.subr.mxu0 0.0
    %1282 = vmatpush1.msra.mxu0 0.0
    %1283 = vmatprep.subr.mxu0 0.0
    %1284 = vmatpush1.msra.mxu0 0.0
    %1285 = vmatprep.subr.mxu0 0.0
    %1286 = vmatpush1.msra.mxu0 0.0
    %1287 = vmatprep.subr.mxu0 0.0
    %1288 = vmatpush1.msra.mxu0 0.0
    %1289 = vmatprep.subr.mxu0 0.0
    %1290 = vmatpush1.msra.mxu0 0.0
    %1291 = vmatprep.subr.mxu0 0.0
    %1292 = vmatpush1.msra.mxu0 0.0
    %1293 = vmatprep.subr.mxu0 0.0
    %1294 = vmatpush1.msra.mxu0 0.0
    %1295 = vmatprep.subr.mxu0 0.0
    %1296 = vmatpush1.msra.mxu0 0.0
    %1297 = vmatprep.subr.mxu0 0.0
    %1298 = vmatpush1.msra.mxu0 0.0
    %1299 = vmatprep.subr.mxu0 0.0
    %1300 = vmatpush1.msra.mxu0 0.0
    %1301 = vmatprep.subr.mxu0 0.0
    %1302 = vmatpush1.msra.mxu0 0.0
    %1303 = vmatprep.subr.mxu0 0.0
    %1304 = vmatpush1.msra.mxu0 0.0
    %1305 = vmatprep.subr.mxu0 0.0
    %1306 = vmatpush1.msra.mxu0 0.0
    %1307 = vmatprep.subr.mxu0 0.0
    %1308 = vmatpush1.msra.mxu0 0.0
    %1309 = vmatprep.subr.mxu0 0.0
    %1310 = vmatpush1.msra.mxu0 0.0
    %1311 = vmatprep.mubr.f32.mxu0 0.0
    %v1312 = vand.u32 %v740, 4294901760
    %1313 = vmatmul.mubr.f32.gmra.mrb[0].mxu0 %v1312
    %v1314 = vpop.f32.mrb[0].mxu0
    %v1315 = vadd.f32 %v1196, %v1314
    %v1316 = vpop.f32.mrb[0].mxu0
    %1317 = vdwg.mxu0
    %1318 = vmatprep.subr.mxu0 0.0
    %v1319 = vand.u32 %v742, 4294901760
    %1320 = vmatpush1.msra.mxu0 %v1319
    %1321 = vmatprep.subr.mxu0 0.0
    %v1322 = vand.u32 %v743, 4294901760
    %1323 = vmatpush1.msra.mxu0 %v1322
    %1324 = vmatprep.subr.mxu0 0.0
    %v1325 = vand.u32 %v744, 4294901760
    %1326 = vmatpush1.msra.mxu0 %v1325
    %1327 = vmatprep.subr.mxu0 0.0
    %v1328 = vand.u32 %v745, 4294901760
    %1329 = vmatpush1.msra.mxu0 %v1328
    %1330 = vmatprep.subr.mxu0 0.0
    %v1331 = vand.u32 %v746, 4294901760
    %1332 = vmatpush1.msra.mxu0 %v1331
    %1333 = vmatprep.subr.mxu0 0.0
    %v1334 = vand.u32 %v747, 4294901760
    %1335 = vmatpush1.msra.mxu0 %v1334
    %1336 = vmatprep.subr.mxu0 0.0
    %v1337 = vand.u32 %v748, 4294901760
    %1338 = vmatpush1.msra.mxu0 %v1337
    %1339 = vmatprep.subr.mxu0 0.0
    %v1340 = vand.u32 %v749, 4294901760
    %1341 = vmatpush1.msra.mxu0 %v1340
    %1342 = vmatprep.subr.mxu0 0.0
    %v1343 = vand.u32 %v750, 4294901760
    %1344 = vmatpush1.msra.mxu0 %v1343
    %1345 = vmatprep.subr.mxu0 0.0
    %v1346 = vand.u32 %v751, 4294901760
    %1347 = vmatpush1.msra.mxu0 %v1346
    %1348 = vmatprep.subr.mxu0 0.0
    %v1349 = vand.u32 %v752, 4294901760
    %1350 = vmatpush1.msra.mxu0 %v1349
    %1351 = vmatprep.subr.mxu0 0.0
    %v1352 = vand.u32 %v753, 4294901760
    %1353 = vmatpush1.msra.mxu0 %v1352
    %1354 = vmatprep.subr.mxu0 0.0
    %v1355 = vand.u32 %v754, 4294901760
    %1356 = vmatpush1.msra.mxu0 %v1355
    %1357 = vmatprep.subr.mxu0 0.0
    %v1358 = vand.u32 %v755, 4294901760
    %1359 = vmatpush1.msra.mxu0 %v1358
    %1360 = vmatprep.subr.mxu0 0.0
    %v1361 = vand.u32 %v756, 4294901760
    %1362 = vmatpush1.msra.mxu0 %v1361
    %1363 = vmatprep.subr.mxu0 0.0
    %v1364 = vand.u32 %v757, 4294901760
    %1365 = vmatpush1.msra.mxu0 %v1364
    %1366 = vmatprep.subr.mxu0 0.0
    %1367 = vmatpush1.msra.mxu0 0.0
    %1368 = vmatprep.subr.mxu0 0.0
    %1369 = vmatpush1.msra.mxu0 0.0
    %1370 = vmatprep.subr.mxu0 0.0
    %1371 = vmatpush1.msra.mxu0 0.0
    %1372 = vmatprep.subr.mxu0 0.0
    %1373 = vmatpush1.msra.mxu0 0.0
    %1374 = vmatprep.subr.mxu0 0.0
    %1375 = vmatpush1.msra.mxu0 0.0
    %1376 = vmatprep.subr.mxu0 0.0
    %1377 = vmatpush1.msra.mxu0 0.0
    %1378 = vmatprep.subr.mxu0 0.0
    %1379 = vmatpush1.msra.mxu0 0.0
    %1380 = vmatprep.subr.mxu0 0.0
    %1381 = vmatpush1.msra.mxu0 0.0
    %1382 = vmatprep.subr.mxu0 0.0
    %1383 = vmatpush1.msra.mxu0 0.0
    %1384 = vmatprep.subr.mxu0 0.0
    %1385 = vmatpush1.msra.mxu0 0.0
    %1386 = vmatprep.subr.mxu0 0.0
    %1387 = vmatpush1.msra.mxu0 0.0
    %1388 = vmatprep.subr.mxu0 0.0
    %1389 = vmatpush1.msra.mxu0 0.0
    %1390 = vmatprep.subr.mxu0 0.0
    %1391 = vmatpush1.msra.mxu0 0.0
    %1392 = vmatprep.subr.mxu0 0.0
    %1393 = vmatpush1.msra.mxu0 0.0
    %1394 = vmatprep.subr.mxu0 0.0
    %1395 = vmatpush1.msra.mxu0 0.0
    %1396 = vmatprep.subr.mxu0 0.0
    %1397 = vmatpush1.msra.mxu0 0.0
    %1398 = vmatprep.mubr.f32.mxu0 0.0
    %v1399 = vand.u32 %v740, 4294901760
    %1400 = vmatmul.mubr.f32.gmra.mrb[0].mxu0 %v1399
    %v1401 = vpop.f32.mrb[0].mxu0
    %v1402 = vadd.f32 %v1315, %v1401
    %v1403 = vpop.f32.mrb[0].mxu0
    %1404 = vdwg.mxu0
    %1405 = vadd.xlane.f32.xlu0 %v1402
    %v1406 = vpop.xlane.xlu0 %1405
    %v1407 = vmul.f32 %v1406, 0.015625
    %v1408 = vmul.f32 %v1402, %v1402
    %1409 = vadd.xlane.f32.xlu0 %v1408
    %v1410 = vpop.xlane.xlu0 %1409
    %v1411 = vmul.f32 %v1410, 0.015625
    %v1412 = vmul.f32 %v1407, %v1407
    %v1413 = vsub.f32 %v1411, %v1412
    %v1414 = vadd.f32 %v1413, 1e-05
    %v1415 = vrsqrt.pop %v1414
    %v1416 = vlaneseq
    %v1417 = vshrl.u32 %v1416, 7
    %v1418 = vsub.s32 1, %v1417
    %v1419 = vrot.slane %v759, %v1418
    %v1420 = vmul.f32 %v1419, %v1415
    %v1421 = vsub.f32 %v1402, %v1407
    %v1422 = vmul.f32 %v1421, %v1420
    %v1423 = vlaneseq
    %v1424 = vshrl.u32 %v1423, 7
    %v1425 = vsub.s32 2, %v1424
    %v1426 = vrot.slane %v759, %v1425
    %v1427 = vadd.f32 %v1422, %v1426
    %v1428 = vmax.f32 %v1427, 0.0
    %s1429 = scalar_lea.vmem [#allocation5], 256
    %v1430 = vld [vmem:[%s1429] sm:$0xff]
    %v1431 = vld [vmem:[%s1429 + $0x8] sm:$0xff]
    %v1432 = vld [vmem:[%s1429 + $0x10] sm:$0xff]
    %v1433 = vld [vmem:[%s1429 + $0x18] sm:$0xff]
    %v1434 = vld [vmem:[%s1429 + $0x20] sm:$0xff]
    %v1435 = vld [vmem:[%s1429 + $0x28] sm:$0xff]
    %v1436 = vld [vmem:[%s1429 + $0x30] sm:$0xff]
    %v1437 = vld [vmem:[%s1429 + $0x38] sm:$0xff]
    %v1438 = vld [vmem:[%s1429 + $0x40] sm:$0xff]
    %v1439 = vld [vmem:[%s1429 + $0x48] sm:$0xff]
    %v1440 = vld [vmem:[%s1429 + $0x50] sm:$0xff]
    %v1441 = vld [vmem:[%s1429 + $0x58] sm:$0xff]
    %v1442 = vld [vmem:[%s1429 + $0x60] sm:$0xff]
    %v1443 = vld [vmem:[%s1429 + $0x68] sm:$0xff]
    %v1444 = vld [vmem:[%s1429 + $0x70] sm:$0xff]
    %v1445 = vld [vmem:[%s1429 + $0x78] sm:$0xff]
    %s1446 = scalar_lea.vmem [#allocation7], 16
    %v1447 = vld [vmem:[%s1446] sm:$0xff]
    %v1448 = vlaneseq
    %v1449 = vshrl.u32 %v1448, 7
    %v1450 = vsub.s32 0, %v1449
    %v1451 = vrot.slane %v1447, %v1450
    %1452 = vmatprep.subr.mxu0 0.0
    %v1453 = vand.u32 %v1430, 4294901760
    %1454 = vmatpush1.msra.mxu0 %v1453
    %1455 = vmatprep.subr.mxu0 0.0
    %v1456 = vand.u32 %v1431, 4294901760
    %1457 = vmatpush1.msra.mxu0 %v1456
    %1458 = vmatprep.subr.mxu0 0.0
    %v1459 = vand.u32 %v1432, 4294901760
    %1460 = vmatpush1.msra.mxu0 %v1459
    %1461 = vmatprep.subr.mxu0 0.0
    %v1462 = vand.u32 %v1433, 4294901760
    %1463 = vmatpush1.msra.mxu0 %v1462
    %1464 = vmatprep.subr.mxu0 0.0
    %v1465 = vand.u32 %v1434, 4294901760
    %1466 = vmatpush1.msra.mxu0 %v1465
    %1467 = vmatprep.subr.mxu0 0.0
    %v1468 = vand.u32 %v1435, 4294901760
    %1469 = vmatpush1.msra.mxu0 %v1468
    %1470 = vmatprep.subr.mxu0 0.0
    %v1471 = vand.u32 %v1436, 4294901760
    %1472 = vmatpush1.msra.mxu0 %v1471
    %1473 = vmatprep.subr.mxu0 0.0
    %v1474 = vand.u32 %v1437, 4294901760
    %1475 = vmatpush1.msra.mxu0 %v1474
    %1476 = vmatprep.subr.mxu0 0.0
    %v1477 = vand.u32 %v1438, 4294901760
    %1478 = vmatpush1.msra.mxu0 %v1477
    %1479 = vmatprep.subr.mxu0 0.0
    %v1480 = vand.u32 %v1439, 4294901760
    %1481 = vmatpush1.msra.mxu0 %v1480
    %1482 = vmatprep.subr.mxu0 0.0
    %v1483 = vand.u32 %v1440, 4294901760
    %1484 = vmatpush1.msra.mxu0 %v1483
    %1485 = vmatprep.subr.mxu0 0.0
    %v1486 = vand.u32 %v1441, 4294901760
    %1487 = vmatpush1.msra.mxu0 %v1486
    %1488 = vmatprep.subr.mxu0 0.0
    %v1489 = vand.u32 %v1442, 4294901760
    %1490 = vmatpush1.msra.mxu0 %v1489
    %1491 = vmatprep.subr.mxu0 0.0
    %v1492 = vand.u32 %v1443, 4294901760
    %1493 = vmatpush1.msra.mxu0 %v1492
    %1494 = vmatprep.subr.mxu0 0.0
    %v1495 = vand.u32 %v1444, 4294901760
    %1496 = vmatpush1.msra.mxu0 %v1495
    %1497 = vmatprep.subr.mxu0 0.0
    %v1498 = vand.u32 %v1445, 4294901760
    %1499 = vmatpush1.msra.mxu0 %v1498
    %1500 = vmatprep.subr.mxu0 0.0
    %1501 = vmatpush1.msra.mxu0 0.0
    %1502 = vmatprep.subr.mxu0 0.0
    %1503 = vmatpush1.msra.mxu0 0.0
    %1504 = vmatprep.subr.mxu0 0.0
    %1505 = vmatpush1.msra.mxu0 0.0
    %1506 = vmatprep.subr.mxu0 0.0
    %1507 = vmatpush1.msra.mxu0 0.0
    %1508 = vmatprep.subr.mxu0 0.0
    %1509 = vmatpush1.msra.mxu0 0.0
    %1510 = vmatprep.subr.mxu0 0.0
    %1511 = vmatpush1.msra.mxu0 0.0
    %1512 = vmatprep.subr.mxu0 0.0
    %1513 = vmatpush1.msra.mxu0 0.0
    %1514 = vmatprep.subr.mxu0 0.0
    %1515 = vmatpush1.msra.mxu0 0.0
    %1516 = vmatprep.subr.mxu0 0.0
    %1517 = vmatpush1.msra.mxu0 0.0
    %1518 = vmatprep.subr.mxu0 0.0
    %1519 = vmatpush1.msra.mxu0 0.0
    %1520 = vmatprep.subr.mxu0 0.0
    %1521 = vmatpush1.msra.mxu0 0.0
    %1522 = vmatprep.subr.mxu0 0.0
    %1523 = vmatpush1.msra.mxu0 0.0
    %1524 = vmatprep.subr.mxu0 0.0
    %1525 = vmatpush1.msra.mxu0 0.0
    %1526 = vmatprep.subr.mxu0 0.0
    %1527 = vmatpush1.msra.mxu0 0.0
    %1528 = vmatprep.subr.mxu0 0.0
    %1529 = vmatpush1.msra.mxu0 0.0
    %1530 = vmatprep.subr.mxu0 0.0
    %1531 = vmatpush1.msra.mxu0 0.0
    %1532 = vmatprep.mubr.f32.mxu0 0.0
    %v1533 = vand.u32 %v1428, 4294901760
    %v1534 = vsub.f32 %v1428, %v1533
    %v1535 = vand.u32 %v1534, 4294901760
    %v1536 = vsub.f32 %v1534, %v1535
    %v1537 = vand.u32 %v1536, 4294901760
    %1538 = vmatmul.mubr.f32.gmra.mrb[0].mxu0 %v1537
    %v1539 = vpop.f32.mrb[0].mxu0
    %v1540 = vadd.f32 %v1451, %v1539
    %v1541 = vpop.f32.mrb[0].mxu0
    %1542 = vdwg.mxu0
    %1543 = vmatprep.subr.mxu0 0.0
    %v1544 = vand.u32 %v1430, 4294901760
    %v1545 = vsub.f32 %v1430, %v1544
    %v1546 = vand.u32 %v1545, 4294901760
    %v1547 = vsub.f32 %v1545, %v1546
    %v1548 = vand.u32 %v1547, 4294901760
    %1549 = vmatpush1.msra.mxu0 %v1548
    %1550 = vmatprep.subr.mxu0 0.0
    %v1551 = vand.u32 %v1431, 4294901760
    %v1552 = vsub.f32 %v1431, %v1551
    %v1553 = vand.u32 %v1552, 4294901760
    %v1554 = vsub.f32 %v1552, %v1553
    %v1555 = vand.u32 %v1554, 4294901760
    %1556 = vmatpush1.msra.mxu0 %v1555
    %1557 = vmatprep.subr.mxu0 0.0
    %v1558 = vand.u32 %v1432, 4294901760
    %v1559 = vsub.f32 %v1432, %v1558
    %v1560 = vand.u32 %v1559, 4294901760
    %v1561 = vsub.f32 %v1559, %v1560
    %v1562 = vand.u32 %v1561, 4294901760
    %1563 = vmatpush1.msra.mxu0 %v1562
    %1564 = vmatprep.subr.mxu0 0.0
    %v1565 = vand.u32 %v1433, 4294901760
    %v1566 = vsub.f32 %v1433, %v1565
    %v1567 = vand.u32 %v1566, 4294901760
    %v1568 = vsub.f32 %v1566, %v1567
    %v1569 = vand.u32 %v1568, 4294901760
    %1570 = vmatpush1.msra.mxu0 %v1569
    %1571 = vmatprep.subr.mxu0 0.0
    %v1572 = vand.u32 %v1434, 4294901760
    %v1573 = vsub.f32 %v1434, %v1572
    %v1574 = vand.u32 %v1573, 4294901760
    %v1575 = vsub.f32 %v1573, %v1574
    %v1576 = vand.u32 %v1575, 4294901760
    %1577 = vmatpush1.msra.mxu0 %v1576
    %1578 = vmatprep.subr.mxu0 0.0
    %v1579 = vand.u32 %v1435, 4294901760
    %v1580 = vsub.f32 %v1435, %v1579
    %v1581 = vand.u32 %v1580, 4294901760
    %v1582 = vsub.f32 %v1580, %v1581
    %v1583 = vand.u32 %v1582, 4294901760
    %1584 = vmatpush1.msra.mxu0 %v1583
    %1585 = vmatprep.subr.mxu0 0.0
    %v1586 = vand.u32 %v1436, 4294901760
    %v1587 = vsub.f32 %v1436, %v1586
    %v1588 = vand.u32 %v1587, 4294901760
    %v1589 = vsub.f32 %v1587, %v1588
    %v1590 = vand.u32 %v1589, 4294901760
    %1591 = vmatpush1.msra.mxu0 %v1590
    %1592 = vmatprep.subr.mxu0 0.0
    %v1593 = vand.u32 %v1437, 4294901760
    %v1594 = vsub.f32 %v1437, %v1593
    %v1595 = vand.u32 %v1594, 4294901760
    %v1596 = vsub.f32 %v1594, %v1595
    %v1597 = vand.u32 %v1596, 4294901760
    %1598 = vmatpush1.msra.mxu0 %v1597
    %1599 = vmatprep.subr.mxu0 0.0
    %v1600 = vand.u32 %v1438, 4294901760
    %v1601 = vsub.f32 %v1438, %v1600
    %v1602 = vand.u32 %v1601, 4294901760
    %v1603 = vsub.f32 %v1601, %v1602
    %v1604 = vand.u32 %v1603, 4294901760
    %1605 = vmatpush1.msra.mxu0 %v1604
    %1606 = vmatprep.subr.mxu0 0.0
    %v1607 = vand.u32 %v1439, 4294901760
    %v1608 = vsub.f32 %v1439, %v1607
    %v1609 = vand.u32 %v1608, 4294901760
    %v1610 = vsub.f32 %v1608, %v1609
    %v1611 = vand.u32 %v1610, 4294901760
    %1612 = vmatpush1.msra.mxu0 %v1611
    %1613 = vmatprep.subr.mxu0 0.0
    %v1614 = vand.u32 %v1440, 4294901760
    %v1615 = vsub.f32 %v1440, %v1614
    %v1616 = vand.u32 %v1615, 4294901760
    %v1617 = vsub.f32 %v1615, %v1616
    %v1618 = vand.u32 %v1617, 4294901760
    %1619 = vmatpush1.msra.mxu0 %v1618
    %1620 = vmatprep.subr.mxu0 0.0
    %v1621 = vand.u32 %v1441, 4294901760
    %v1622 = vsub.f32 %v1441, %v1621
    %v1623 = vand.u32 %v1622, 4294901760
    %v1624 = vsub.f32 %v1622, %v1623
    %v1625 = vand.u32 %v1624, 4294901760
    %1626 = vmatpush1.msra.mxu0 %v1625
    %1627 = vmatprep.subr.mxu0 0.0
    %v1628 = vand.u32 %v1442, 4294901760
    %v1629 = vsub.f32 %v1442, %v1628
    %v1630 = vand.u32 %v1629, 4294901760
    %v1631 = vsub.f32 %v1629, %v1630
    %v1632 = vand.u32 %v1631, 4294901760
    %1633 = vmatpush1.msra.mxu0 %v1632
    %1634 = vmatprep.subr.mxu0 0.0
    %v1635 = vand.u32 %v1443, 4294901760
    %v1636 = vsub.f32 %v1443, %v1635
    %v1637 = vand.u32 %v1636, 4294901760
    %v1638 = vsub.f32 %v1636, %v1637
    %v1639 = vand.u32 %v1638, 4294901760
    %1640 = vmatpush1.msra.mxu0 %v1639
    %1641 = vmatprep.subr.mxu0 0.0
    %v1642 = vand.u32 %v1444, 4294901760
    %v1643 = vsub.f32 %v1444, %v1642
    %v1644 = vand.u32 %v1643, 4294901760
    %v1645 = vsub.f32 %v1643, %v1644
    %v1646 = vand.u32 %v1645, 4294901760
    %1647 = vmatpush1.msra.mxu0 %v1646
    %1648 = vmatprep.subr.mxu0 0.0
    %v1649 = vand.u32 %v1445, 4294901760
    %v1650 = vsub.f32 %v1445, %v1649
    %v1651 = vand.u32 %v1650, 4294901760
    %v1652 = vsub.f32 %v1650, %v1651
    %v1653 = vand.u32 %v1652, 4294901760
    %1654 = vmatpush1.msra.mxu0 %v1653
    %1655 = vmatprep.subr.mxu0 0.0
    %1656 = vmatpush1.msra.mxu0 0.0
    %1657 = vmatprep.subr.mxu0 0.0
    %1658 = vmatpush1.msra.mxu0 0.0
    %1659 = vmatprep.subr.mxu0 0.0
    %1660 = vmatpush1.msra.mxu0 0.0
    %1661 = vmatprep.subr.mxu0 0.0
    %1662 = vmatpush1.msra.mxu0 0.0
    %1663 = vmatprep.subr.mxu0 0.0
    %1664 = vmatpush1.msra.mxu0 0.0
    %1665 = vmatprep.subr.mxu0 0.0
    %1666 = vmatpush1.msra.mxu0 0.0
    %1667 = vmatprep.subr.mxu0 0.0
    %1668 = vmatpush1.msra.mxu0 0.0
    %1669 = vmatprep.subr.mxu0 0.0
    %1670 = vmatpush1.msra.mxu0 0.0
    %1671 = vmatprep.subr.mxu0 0.0
    %1672 = vmatpush1.msra.mxu0 0.0
    %1673 = vmatprep.subr.mxu0 0.0
    %1674 = vmatpush1.msra.mxu0 0.0
    %1675 = vmatprep.subr.mxu0 0.0
    %1676 = vmatpush1.msra.mxu0 0.0
    %1677 = vmatprep.subr.mxu0 0.0
    %1678 = vmatpush1.msra.mxu0 0.0
    %1679 = vmatprep.subr.mxu0 0.0
    %1680 = vmatpush1.msra.mxu0 0.0
    %1681 = vmatprep.subr.mxu0 0.0
    %1682 = vmatpush1.msra.mxu0 0.0
    %1683 = vmatprep.subr.mxu0 0.0
    %1684 = vmatpush1.msra.mxu0 0.0
    %1685 = vmatprep.subr.mxu0 0.0
    %1686 = vmatpush1.msra.mxu0 0.0
    %1687 = vmatprep.mubr.f32.mxu0 0.0
    %v1688 = vand.u32 %v1428, 4294901760
    %1689 = vmatmul.mubr.f32.gmra.mrb[0].mxu0 %v1688
    %v1690 = vpop.f32.mrb[0].mxu0
    %v1691 = vadd.f32 %v1540, %v1690
    %v1692 = vpop.f32.mrb[0].mxu0
    %1693 = vdwg.mxu0
    %1694 = vmatprep.subr.mxu0 0.0
    %v1695 = vand.u32 %v1430, 4294901760
    %v1696 = vsub.f32 %v1430, %v1695
    %1697 = vmatpush1.msra.mxu0 %v1696
    %1698 = vmatprep.subr.mxu0 0.0
    %v1699 = vand.u32 %v1431, 4294901760
    %v1700 = vsub.f32 %v1431, %v1699
    %1701 = vmatpush1.msra.mxu0 %v1700
    %1702 = vmatprep.subr.mxu0 0.0
    %v1703 = vand.u32 %v1432, 4294901760
    %v1704 = vsub.f32 %v1432, %v1703
    %1705 = vmatpush1.msra.mxu0 %v1704
    %1706 = vmatprep.subr.mxu0 0.0
    %v1707 = vand.u32 %v1433, 4294901760
    %v1708 = vsub.f32 %v1433, %v1707
    %1709 = vmatpush1.msra.mxu0 %v1708
    %1710 = vmatprep.subr.mxu0 0.0
    %v1711 = vand.u32 %v1434, 4294901760
    %v1712 = vsub.f32 %v1434, %v1711
    %1713 = vmatpush1.msra.mxu0 %v1712
    %1714 = vmatprep.subr.mxu0 0.0
    %v1715 = vand.u32 %v1435, 4294901760
    %v1716 = vsub.f32 %v1435, %v1715
    %1717 = vmatpush1.msra.mxu0 %v1716
    %1718 = vmatprep.subr.mxu0 0.0
    %v1719 = vand.u32 %v1436, 4294901760
    %v1720 = vsub.f32 %v1436, %v1719
    %1721 = vmatpush1.msra.mxu0 %v1720
    %1722 = vmatprep.subr.mxu0 0.0
    %v1723 = vand.u32 %v1437, 4294901760
    %v1724 = vsub.f32 %v1437, %v1723
    %1725 = vmatpush1.msra.mxu0 %v1724
    %1726 = vmatprep.subr.mxu0 0.0
    %v1727 = vand.u32 %v1438, 4294901760
    %v1728 = vsub.f32 %v1438, %v1727
    %1729 = vmatpush1.msra.mxu0 %v1728
    %1730 = vmatprep.subr.mxu0 0.0
    %v1731 = vand.u32 %v1439, 4294901760
    %v1732 = vsub.f32 %v1439, %v1731
    %1733 = vmatpush1.msra.mxu0 %v1732
    %1734 = vmatprep.subr.mxu0 0.0
    %v1735 = vand.u32 %v1440, 4294901760
    %v1736 = vsub.f32 %v1440, %v1735
    %1737 = vmatpush1.msra.mxu0 %v1736
    %1738 = vmatprep.subr.mxu0 0.0
    %v1739 = vand.u32 %v1441, 4294901760
    %v1740 = vsub.f32 %v1441, %v1739
    %1741 = vmatpush1.msra.mxu0 %v1740
    %1742 = vmatprep.subr.mxu0 0.0
    %v1743 = vand.u32 %v1442, 4294901760
    %v1744 = vsub.f32 %v1442, %v1743
    %1745 = vmatpush1.msra.mxu0 %v1744
    %1746 = vmatprep.subr.mxu0 0.0
    %v1747 = vand.u32 %v1443, 4294901760
    %v1748 = vsub.f32 %v1443, %v1747
    %1749 = vmatpush1.msra.mxu0 %v1748
    %1750 = vmatprep.subr.mxu0 0.0
    %v1751 = vand.u32 %v1444, 4294901760
    %v1752 = vsub.f32 %v1444, %v1751
    %1753 = vmatpush1.msra.mxu0 %v1752
    %1754 = vmatprep.subr.mxu0 0.0
    %v1755 = vand.u32 %v1445, 4294901760
    %v1756 = vsub.f32 %v1445, %v1755
    %1757 = vmatpush1.msra.mxu0 %v1756
    %1758 = vmatprep.subr.mxu0 0.0
    %1759 = vmatpush1.msra.mxu0 0.0
    %1760 = vmatprep.subr.mxu0 0.0
    %1761 = vmatpush1.msra.mxu0 0.0
    %1762 = vmatprep.subr.mxu0 0.0
    %1763 = vmatpush1.msra.mxu0 0.0
    %1764 = vmatprep.subr.mxu0 0.0
    %1765 = vmatpush1.msra.mxu0 0.0
    %1766 = vmatprep.subr.mxu0 0.0
    %1767 = vmatpush1.msra.mxu0 0.0
    %1768 = vmatprep.subr.mxu0 0.0
    %1769 = vmatpush1.msra.mxu0 0.0
    %1770 = vmatprep.subr.mxu0 0.0
    %1771 = vmatpush1.msra.mxu0 0.0
    %1772 = vmatprep.subr.mxu0 0.0
    %1773 = vmatpush1.msra.mxu0 0.0
    %1774 = vmatprep.subr.mxu0 0.0
    %1775 = vmatpush1.msra.mxu0 0.0
    %1776 = vmatprep.subr.mxu0 0.0
    %1777 = vmatpush1.msra.mxu0 0.0
    %1778 = vmatprep.subr.mxu0 0.0
    %1779 = vmatpush1.msra.mxu0 0.0
    %1780 = vmatprep.subr.mxu0 0.0
    %1781 = vmatpush1.msra.mxu0 0.0
    %1782 = vmatprep.subr.mxu0 0.0
    %1783 = vmatpush1.msra.mxu0 0.0
    %1784 = vmatprep.subr.mxu0 0.0
    %1785 = vmatpush1.msra.mxu0 0.0
    %1786 = vmatprep.subr.mxu0 0.0
    %1787 = vmatpush1.msra.mxu0 0.0
    %1788 = vmatprep.subr.mxu0 0.0
    %1789 = vmatpush1.msra.mxu0 0.0
    %1790 = vmatprep.mubr.f32.mxu0 0.0
    %v1791 = vand.u32 %v1428, 4294901760
    %v1792 = vsub.f32 %v1428, %v1791
    %1793 = vmatmul.mubr.f32.gmra.mrb[0].mxu0 %v1792
    %v1794 = vpop.f32.mrb[0].mxu0
    %v1795 = vadd.f32 %v1691, %v1794
    %v1796 = vpop.f32.mrb[0].mxu0
    %1797 = vdwg.mxu0
    %1798 = vmatprep.subr.mxu0 0.0
    %v1799 = vand.u32 %v1430, 4294901760
    %1800 = vmatpush1.msra.mxu0 %v1799
    %1801 = vmatprep.subr.mxu0 0.0
    %v1802 = vand.u32 %v1431, 4294901760
    %1803 = vmatpush1.msra.mxu0 %v1802
    %1804 = vmatprep.subr.mxu0 0.0
    %v1805 = vand.u32 %v1432, 4294901760
    %1806 = vmatpush1.msra.mxu0 %v1805
    %1807 = vmatprep.subr.mxu0 0.0
    %v1808 = vand.u32 %v1433, 4294901760
    %1809 = vmatpush1.msra.mxu0 %v1808
    %1810 = vmatprep.subr.mxu0 0.0
    %v1811 = vand.u32 %v1434, 4294901760
    %1812 = vmatpush1.msra.mxu0 %v1811
    %1813 = vmatprep.subr.mxu0 0.0
    %v1814 = vand.u32 %v1435, 4294901760
    %1815 = vmatpush1.msra.mxu0 %v1814
    %1816 = vmatprep.subr.mxu0 0.0
    %v1817 = vand.u32 %v1436, 4294901760
    %1818 = vmatpush1.msra.mxu0 %v1817
    %1819 = vmatprep.subr.mxu0 0.0
    %v1820 = vand.u32 %v1437, 4294901760
    %1821 = vmatpush1.msra.mxu0 %v1820
    %1822 = vmatprep.subr.mxu0 0.0
    %v1823 = vand.u32 %v1438, 4294901760
    %1824 = vmatpush1.msra.mxu0 %v1823
    %1825 = vmatprep.subr.mxu0 0.0
    %v1826 = vand.u32 %v1439, 4294901760
    %1827 = vmatpush1.msra.mxu0 %v1826
    %1828 = vmatprep.subr.mxu0 0.0
    %v1829 = vand.u32 %v1440, 4294901760
    %1830 = vmatpush1.msra.mxu0 %v1829
    %1831 = vmatprep.subr.mxu0 0.0
    %v1832 = vand.u32 %v1441, 4294901760
    %1833 = vmatpush1.msra.mxu0 %v1832
    %1834 = vmatprep.subr.mxu0 0.0
    %v1835 = vand.u32 %v1442, 4294901760
    %1836 = vmatpush1.msra.mxu0 %v1835
    %1837 = vmatprep.subr.mxu0 0.0
    %v1838 = vand.u32 %v1443, 4294901760
    %1839 = vmatpush1.msra.mxu0 %v1838
    %1840 = vmatprep.subr.mxu0 0.0
    %v1841 = vand.u32 %v1444, 4294901760
    %1842 = vmatpush1.msra.mxu0 %v1841
    %1843 = vmatprep.subr.mxu0 0.0
    %v1844 = vand.u32 %v1445, 4294901760
    %1845 = vmatpush1.msra.mxu0 %v1844
    %1846 = vmatprep.subr.mxu0 0.0
    %1847 = vmatpush1.msra.mxu0 0.0
    %1848 = vmatprep.subr.mxu0 0.0
    %1849 = vmatpush1.msra.mxu0 0.0
    %1850 = vmatprep.subr.mxu0 0.0
    %1851 = vmatpush1.msra.mxu0 0.0
    %1852 = vmatprep.subr.mxu0 0.0
    %1853 = vmatpush1.msra.mxu0 0.0
    %1854 = vmatprep.subr.mxu0 0.0
    %1855 = vmatpush1.msra.mxu0 0.0
    %1856 = vmatprep.subr.mxu0 0.0
    %1857 = vmatpush1.msra.mxu0 0.0
    %1858 = vmatprep.subr.mxu0 0.0
    %1859 = vmatpush1.msra.mxu0 0.0
    %1860 = vmatprep.subr.mxu0 0.0
    %1861 = vmatpush1.msra.mxu0 0.0
    %1862 = vmatprep.subr.mxu0 0.0
    %1863 = vmatpush1.msra.mxu0 0.0
    %1864 = vmatprep.subr.mxu0 0.0
    %1865 = vmatpush1.msra.mxu0 0.0
    %1866 = vmatprep.subr.mxu0 0.0
    %1867 = vmatpush1.msra.mxu0 0.0
    %1868 = vmatprep.subr.mxu0 0.0
    %1869 = vmatpush1.msra.mxu0 0.0
    %1870 = vmatprep.subr.mxu0 0.0
    %1871 = vmatpush1.msra.mxu0 0.0
    %1872 = vmatprep.subr.mxu0 0.0
    %1873 = vmatpush1.msra.mxu0 0.0
    %1874 = vmatprep.subr.mxu0 0.0
    %1875 = vmatpush1.msra.mxu0 0.0
    %1876 = vmatprep.subr.mxu0 0.0
    %1877 = vmatpush1.msra.mxu0 0.0
    %1878 = vmatprep.mubr.f32.mxu0 0.0
    %v1879 = vand.u32 %v1428, 4294901760
    %v1880 = vsub.f32 %v1428, %v1879
    %v1881 = vand.u32 %v1880, 4294901760
    %1882 = vmatmul.mubr.f32.gmra.mrb[0].mxu0 %v1881
    %v1883 = vpop.f32.mrb[0].mxu0
    %v1884 = vadd.f32 %v1795, %v1883
    %v1885 = vpop.f32.mrb[0].mxu0
    %1886 = vdwg.mxu0
    %1887 = vmatprep.subr.mxu0 0.0
    %v1888 = vand.u32 %v1430, 4294901760
    %v1889 = vsub.f32 %v1430, %v1888
    %v1890 = vand.u32 %v1889, 4294901760
    %1891 = vmatpush1.msra.mxu0 %v1890
    %1892 = vmatprep.subr.mxu0 0.0
    %v1893 = vand.u32 %v1431, 4294901760
    %v1894 = vsub.f32 %v1431, %v1893
    %v1895 = vand.u32 %v1894, 4294901760
    %1896 = vmatpush1.msra.mxu0 %v1895
    %1897 = vmatprep.subr.mxu0 0.0
    %v1898 = vand.u32 %v1432, 4294901760
    %v1899 = vsub.f32 %v1432, %v1898
    %v1900 = vand.u32 %v1899, 4294901760
    %1901 = vmatpush1.msra.mxu0 %v1900
    %1902 = vmatprep.subr.mxu0 0.0
    %v1903 = vand.u32 %v1433, 4294901760
    %v1904 = vsub.f32 %v1433, %v1903
    %v1905 = vand.u32 %v1904, 4294901760
    %1906 = vmatpush1.msra.mxu0 %v1905
    %1907 = vmatprep.subr.mxu0 0.0
    %v1908 = vand.u32 %v1434, 4294901760
    %v1909 = vsub.f32 %v1434, %v1908
    %v1910 = vand.u32 %v1909, 4294901760
    %1911 = vmatpush1.msra.mxu0 %v1910
    %1912 = vmatprep.subr.mxu0 0.0
    %v1913 = vand.u32 %v1435, 4294901760
    %v1914 = vsub.f32 %v1435, %v1913
    %v1915 = vand.u32 %v1914, 4294901760
    %1916 = vmatpush1.msra.mxu0 %v1915
    %1917 = vmatprep.subr.mxu0 0.0
    %v1918 = vand.u32 %v1436, 4294901760
    %v1919 = vsub.f32 %v1436, %v1918
    %v1920 = vand.u32 %v1919, 4294901760
    %1921 = vmatpush1.msra.mxu0 %v1920
    %1922 = vmatprep.subr.mxu0 0.0
    %v1923 = vand.u32 %v1437, 4294901760
    %v1924 = vsub.f32 %v1437, %v1923
    %v1925 = vand.u32 %v1924, 4294901760
    %1926 = vmatpush1.msra.mxu0 %v1925
    %1927 = vmatprep.subr.mxu0 0.0
    %v1928 = vand.u32 %v1438, 4294901760
    %v1929 = vsub.f32 %v1438, %v1928
    %v1930 = vand.u32 %v1929, 4294901760
    %1931 = vmatpush1.msra.mxu0 %v1930
    %1932 = vmatprep.subr.mxu0 0.0
    %v1933 = vand.u32 %v1439, 4294901760
    %v1934 = vsub.f32 %v1439, %v1933
    %v1935 = vand.u32 %v1934, 4294901760
    %1936 = vmatpush1.msra.mxu0 %v1935
    %1937 = vmatprep.subr.mxu0 0.0
    %v1938 = vand.u32 %v1440, 4294901760
    %v1939 = vsub.f32 %v1440, %v1938
    %v1940 = vand.u32 %v1939, 4294901760
    %1941 = vmatpush1.msra.mxu0 %v1940
    %1942 = vmatprep.subr.mxu0 0.0
    %v1943 = vand.u32 %v1441, 4294901760
    %v1944 = vsub.f32 %v1441, %v1943
    %v1945 = vand.u32 %v1944, 4294901760
    %1946 = vmatpush1.msra.mxu0 %v1945
    %1947 = vmatprep.subr.mxu0 0.0
    %v1948 = vand.u32 %v1442, 4294901760
    %v1949 = vsub.f32 %v1442, %v1948
    %v1950 = vand.u32 %v1949, 4294901760
    %1951 = vmatpush1.msra.mxu0 %v1950
    %1952 = vmatprep.subr.mxu0 0.0
    %v1953 = vand.u32 %v1443, 4294901760
    %v1954 = vsub.f32 %v1443, %v1953
    %v1955 = vand.u32 %v1954, 4294901760
    %1956 = vmatpush1.msra.mxu0 %v1955
    %1957 = vmatprep.subr.mxu0 0.0
    %v1958 = vand.u32 %v1444, 4294901760
    %v1959 = vsub.f32 %v1444, %v1958
    %v1960 = vand.u32 %v1959, 4294901760
    %1961 = vmatpush1.msra.mxu0 %v1960
    %1962 = vmatprep.subr.mxu0 0.0
    %v1963 = vand.u32 %v1445, 4294901760
    %v1964 = vsub.f32 %v1445, %v1963
    %v1965 = vand.u32 %v1964, 4294901760
    %1966 = vmatpush1.msra.mxu0 %v1965
    %1967 = vmatprep.subr.mxu0 0.0
    %1968 = vmatpush1.msra.mxu0 0.0
    %1969 = vmatprep.subr.mxu0 0.0
    %1970 = vmatpush1.msra.mxu0 0.0
    %1971 = vmatprep.subr.mxu0 0.0
    %1972 = vmatpush1.msra.mxu0 0.0
    %1973 = vmatprep.subr.mxu0 0.0
    %1974 = vmatpush1.msra.mxu0 0.0
    %1975 = vmatprep.subr.mxu0 0.0
    %1976 = vmatpush1.msra.mxu0 0.0
    %1977 = vmatprep.subr.mxu0 0.0
    %1978 = vmatpush1.msra.mxu0 0.0
    %1979 = vmatprep.subr.mxu0 0.0
    %1980 = vmatpush1.msra.mxu0 0.0
    %1981 = vmatprep.subr.mxu0 0.0
    %1982 = vmatpush1.msra.mxu0 0.0
    %1983 = vmatprep.subr.mxu0 0.0
    %1984 = vmatpush1.msra.mxu0 0.0
    %1985 = vmatprep.subr.mxu0 0.0
    %1986 = vmatpush1.msra.mxu0 0.0
    %1987 = vmatprep.subr.mxu0 0.0
    %1988 = vmatpush1.msra.mxu0 0.0
    %1989 = vmatprep.subr.mxu0 0.0
    %1990 = vmatpush1.msra.mxu0 0.0
    %1991 = vmatprep.subr.mxu0 0.0
    %1992 = vmatpush1.msra.mxu0 0.0
    %1993 = vmatprep.subr.mxu0 0.0
    %1994 = vmatpush1.msra.mxu0 0.0
    %1995 = vmatprep.subr.mxu0 0.0
    %1996 = vmatpush1.msra.mxu0 0.0
    %1997 = vmatprep.subr.mxu0 0.0
    %1998 = vmatpush1.msra.mxu0 0.0
    %1999 = vmatprep.mubr.f32.mxu0 0.0
    %v2000 = vand.u32 %v1428, 4294901760
    %2001 = vmatmul.mubr.f32.gmra.mrb[0].mxu0 %v2000
    %v2002 = vpop.f32.mrb[0].mxu0
    %v2003 = vadd.f32 %v1884, %v2002
    %v2004 = vpop.f32.mrb[0].mxu0
    %2005 = vdwg.mxu0
    %2006 = vmatprep.subr.mxu0 0.0
    %v2007 = vand.u32 %v1430, 4294901760
    %2008 = vmatpush1.msra.mxu0 %v2007
    %2009 = vmatprep.subr.mxu0 0.0
    %v2010 = vand.u32 %v1431, 4294901760
    %2011 = vmatpush1.msra.mxu0 %v2010
    %2012 = vmatprep.subr.mxu0 0.0
    %v2013 = vand.u32 %v1432, 4294901760
    %2014 = vmatpush1.msra.mxu0 %v2013
    %2015 = vmatprep.subr.mxu0 0.0
    %v2016 = vand.u32 %v1433, 4294901760
    %2017 = vmatpush1.msra.mxu0 %v2016
    %2018 = vmatprep.subr.mxu0 0.0
    %v2019 = vand.u32 %v1434, 4294901760
    %2020 = vmatpush1.msra.mxu0 %v2019
    %2021 = vmatprep.subr.mxu0 0.0
    %v2022 = vand.u32 %v1435, 4294901760
    %2023 = vmatpush1.msra.mxu0 %v2022
    %2024 = vmatprep.subr.mxu0 0.0
    %v2025 = vand.u32 %v1436, 4294901760
    %2026 = vmatpush1.msra.mxu0 %v2025
    %2027 = vmatprep.subr.mxu0 0.0
    %v2028 = vand.u32 %v1437, 4294901760
    %2029 = vmatpush1.msra.mxu0 %v2028
    %2030 = vmatprep.subr.mxu0 0.0
    %v2031 = vand.u32 %v1438, 4294901760
    %2032 = vmatpush1.msra.mxu0 %v2031
    %2033 = vmatprep.subr.mxu0 0.0
    %v2034 = vand.u32 %v1439, 4294901760
    %2035 = vmatpush1.msra.mxu0 %v2034
    %2036 = vmatprep.subr.mxu0 0.0
    %v2037 = vand.u32 %v1440, 4294901760
    %2038 = vmatpush1.msra.mxu0 %v2037
    %2039 = vmatprep.subr.mxu0 0.0
    %v2040 = vand.u32 %v1441, 4294901760
    %2041 = vmatpush1.msra.mxu0 %v2040
    %2042 = vmatprep.subr.mxu0 0.0
    %v2043 = vand.u32 %v1442, 4294901760
    %2044 = vmatpush1.msra.mxu0 %v2043
    %2045 = vmatprep.subr.mxu0 0.0
    %v2046 = vand.u32 %v1443, 4294901760
    %2047 = vmatpush1.msra.mxu0 %v2046
    %2048 = vmatprep.subr.mxu0 0.0
    %v2049 = vand.u32 %v1444, 4294901760
    %2050 = vmatpush1.msra.mxu0 %v2049
    %2051 = vmatprep.subr.mxu0 0.0
    %v2052 = vand.u32 %v1445, 4294901760
    %2053 = vmatpush1.msra.mxu0 %v2052
    %2054 = vmatprep.subr.mxu0 0.0
    %2055 = vmatpush1.msra.mxu0 0.0
    %2056 = vmatprep.subr.mxu0 0.0
    %2057 = vmatpush1.msra.mxu0 0.0
    %2058 = vmatprep.subr.mxu0 0.0
    %2059 = vmatpush1.msra.mxu0 0.0
    %2060 = vmatprep.subr.mxu0 0.0
    %2061 = vmatpush1.msra.mxu0 0.0
    %2062 = vmatprep.subr.mxu0 0.0
    %2063 = vmatpush1.msra.mxu0 0.0
    %2064 = vmatprep.subr.mxu0 0.0
    %2065 = vmatpush1.msra.mxu0 0.0
    %2066 = vmatprep.subr.mxu0 0.0
    %2067 = vmatpush1.msra.mxu0 0.0
    %2068 = vmatprep.subr.mxu0 0.0
    %2069 = vmatpush1.msra.mxu0 0.0
    %2070 = vmatprep.subr.mxu0 0.0
    %2071 = vmatpush1.msra.mxu0 0.0
    %2072 = vmatprep.subr.mxu0 0.0
    %2073 = vmatpush1.msra.mxu0 0.0
    %2074 = vmatprep.subr.mxu0 0.0
    %2075 = vmatpush1.msra.mxu0 0.0
    %2076 = vmatprep.subr.mxu0 0.0
    %2077 = vmatpush1.msra.mxu0 0.0
    %2078 = vmatprep.subr.mxu0 0.0
    %2079 = vmatpush1.msra.mxu0 0.0
    %2080 = vmatprep.subr.mxu0 0.0
    %2081 = vmatpush1.msra.mxu0 0.0
    %2082 = vmatprep.subr.mxu0 0.0
    %2083 = vmatpush1.msra.mxu0 0.0
    %2084 = vmatprep.subr.mxu0 0.0
    %2085 = vmatpush1.msra.mxu0 0.0
    %2086 = vmatprep.mubr.f32.mxu0 0.0
    %v2087 = vand.u32 %v1428, 4294901760
    %2088 = vmatmul.mubr.f32.gmra.mrb[0].mxu0 %v2087
    %v2089 = vpop.f32.mrb[0].mxu0
    %v2090 = vadd.f32 %v2003, %v2089
    %v2091 = vpop.f32.mrb[0].mxu0
    %2092 = vdwg.mxu0
    %v2093 = vtanh.pop %v2090
    %2094 = vst [vmem:[#allocation8] sm:$0xff] %v2093
    // Predicated region
    $region26: #{tpu_custom_call.1} parent=1 // pred_check
      _
    $region27: #{tpu_custom_call.1} parent=1 // pred_check_branch
      %2096 = sbr.rel (0) target = $region29
    $region28: #{tpu_custom_call.1} parent=1 // pred_region
      %s2098 = ssub.s32 128, 128
      %2099 = vsyncadd [#allocation4], %s2098
      %s2101 = sshll.u32 [#allocation8], 4
      %s2102 = int_to_ptr.vmem [resolvable:$true] %s2101
      %2104 = dma.vmem_to_hbm [thread:$0]  %s2102, 128, %s3, [#allocation4]
    $region29: #{tpu_custom_call.1} parent=1 // pred_fallthru
      _
    // Predicated region
    $region30: #{tpu_custom_call.1} parent=1 // pred_check
      _
    $region31: #{tpu_custom_call.1} parent=1 // pred_check_branch
      %2106 = sbr.rel (0) target = $region33
    $region32: #{tpu_custom_call.1} parent=1 // pred_region
      %2107 = dma.done [#allocation4], 128
    $region33: #{tpu_custom_call.1} parent=1 // pred_fallthru
      _
    %2108 = vsyncpa [#allocation3], 1
    %2109 = vsyncpa [#allocation6], 1
    %2110 = vsyncpa [#allocation4], 1

</llo_original>
